<compile_context>
chip_gen: v6e
topology: v6e:2x2x1
jax: 0.10.0
libtpu: 0.0.40
codegen_flags: <defaults>
</compile_context>

<pallas_src>
import jax
import jax.numpy as jnp
from jax import lax
from jax.experimental import pallas as pl
from jax.experimental.pallas import tpu as pltpu

RET_RATIO = 0.8
ACT_MAX = 6.0


def _lprnn_kernel(
    x_ref,          # (B, T, I)
    wff_ref,        # (I, F)
    bff_ref,        # (1, F)
    w0_ref,         # (F+H, H)   = [Wih0; Whh0]
    b0_ref,         # (1, H)
    w1_ref,         # (2H, H)    = [Wih1; Whh1]
    b1_ref,         # (1, H)
    wout_ref,       # (H, C)
    bout_ref,       # (1, C)
    out_ref,        # (B, T, C)
    h1s_ref,        # scratch (B, T, H) -- per-step layer-2 outputs
):
    B, T, I = x_ref.shape
    F = wff_ref.shape[1]
    H = w0_ref.shape[1]
    C = wout_ref.shape[1]

    alpha = jnp.float32(RET_RATIO)
    beta = jnp.float32(1.0 - RET_RATIO)
    act_max = jnp.float32(ACT_MAX)

    # ---- Hoisted lpff matmul: no cross-timestep dependence --------------------
    x2d = x_ref[...].reshape(B * T, I)
    aff2d = jnp.clip(
        jnp.dot(x2d, wff_ref[...], preferred_element_type=jnp.float32)
        + bff_ref[...],
        0.0, act_max)
    aff = aff2d.reshape(B, T, F)                       # (B, T, F)

    # ---- Hoist weight loads and bias broadcasts out of the loop ---------------
    w0 = w0_ref[...]
    w1 = w1_ref[...]
    b0 = jnp.broadcast_to(b0_ref[...], (B, H))
    b1 = jnp.broadcast_to(b1_ref[...], (B, H))

    # ---- Recurrence: states live in vregs, loop fully unrolled ----------------
    hff = jnp.zeros((B, F), jnp.float32)
    h0 = jnp.zeros((B, H), jnp.float32)
    h1 = jnp.zeros((B, H), jnp.float32)

    for t in range(T):
        # lpff low-pass filter (VPU only; matmul already hoisted)
        hff = alpha * hff + beta * aff[:, t, :]

        # lpRNN layer 1: fused [hff_t, h0_{t-1}] @ [Wih0; Whh0]
        z0 = jnp.dot(jnp.concatenate([hff, h0], axis=1), w0,
                     preferred_element_type=jnp.float32) + b0
        h0 = alpha * h0 + beta * jnp.clip(z0, 0.0, act_max)

        # lpRNN layer 2: fused [h0_t, h1_{t-1}] @ [Wih1; Whh1]
        z1 = jnp.dot(jnp.concatenate([h0, h1], axis=1), w1,
                     preferred_element_type=jnp.float32) + b1
        h1 = alpha * h1 + beta * jnp.clip(z1, 0.0, act_max)

        # stash for the hoisted output projection (off the recurrence chain)
        h1s_ref[:, t, :] = h1

    # ---- Hoisted Dense output: one matmul + one store -------------------------
    h1_all = h1s_ref[...].reshape(B * T, H)
    y2d = (jnp.dot(h1_all, wout_ref[...], preferred_element_type=jnp.float32)
           + bout_ref[...])
    out_ref[...] = y2d.reshape(B, T, C)


@jax.jit
def small_lprnn_forward(x, params):
    """x: (B, T, input_size) float32; returns (B, T, nCategories)."""
    x = x.astype(jnp.float32)
    B, T, _ = x.shape

    wff, bff, wih0, whh0, b0, wih1, whh1, b1, wout, bout = params
    H = wih0.shape[1]
    C = wout.shape[1]

    # Fuse input-hidden / hidden-hidden weights along the contracting dim.
    w0 = jnp.concatenate([wih0, whh0], axis=0)   # (F+H, H)
    w1 = jnp.concatenate([wih1, whh1], axis=0)   # (2H, H)

    args = (x, wff, bff, w0, b0, w1, b1, wout, bout)
    vmem = pl.BlockSpec(memory_space=pltpu.MemorySpace.VMEM)

    return pl.pallas_call(
        _lprnn_kernel,
        out_shape=jax.ShapeDtypeStruct((B, T, C), jnp.float32),
        in_specs=[vmem] * len(args),
        out_specs=vmem,
        scratch_shapes=[pltpu.VMEM((B, T, H), jnp.float32)],
    )(*args)


def small_lprnn_reference(x, params):
    """Pure-JAX reference for correctness checking (unfused weights)."""
    wff, bff, wih0, whh0, b0, wih1, whh1, b1, wout, bout = params
    x = x.astype(jnp.float32)
    B = x.shape[0]
    F = wff.shape[1]
    H = wih0.shape[1]
    a, bta = RET_RATIO, 1.0 - RET_RATIO

    def step(carry, xt):
        hff, h0, h1 = carry
        hff = a * hff + bta * jnp.clip(xt @ wff + bff, 0.0, ACT_MAX)
        h0 = a * h0 + bta * jnp.clip(hff @ wih0 + h0 @ whh0 + b0, 0.0, ACT_MAX)
        h1 = a * h1 + bta * jnp.clip(h0 @ wih1 + h1 @ whh1 + b1, 0.0, ACT_MAX)
        y = h1 @ wout + bout
        return (hff, h0, h1), y

    init = (jnp.zeros((B, F)), jnp.zeros((B, H)), jnp.zeros((B, H)))
    _, ys = lax.scan(step, init, jnp.transpose(x, (1, 0, 2)))
    return jnp.transpose(ys, (1, 0, 2))


def init_params(key, input_size, lpff_size, hidden, n_categories):
    ks = jax.random.split(key, 10)
    s = 0.1

    def w(k, shape):
        return (s * jax.random.normal(k, shape)).astype(jnp.float32)

    wff = w(ks[0], (input_size, lpff_size))
    bff = w(ks[1], (1, lpff_size))
    wih0 = w(ks[2], (lpff_size, hidden))
    whh0 = w(ks[3], (hidden, hidden))
    b0 = w(ks[4], (1, hidden))
    wih1 = w(ks[5], (hidden, hidden))
    whh1 = w(ks[6], (hidden, hidden))
    b1 = w(ks[7], (1, hidden))
    wout = w(ks[8], (hidden, n_categories))
    bout = w(ks[9], (1, n_categories))
    return (wff, bff, wih0, whh0, b0, wih1, whh1, b1, wout, bout)


if __name__ == "__main__":
    # Small shapes consistent with the module's forward:
    # batch=2, seq=8, input_size=16, lpff_size=32, hidden(nunits)=32, nlayers=2, nCategories=10
    B, T, I = 2, 8, 16
    LPFF, H, C = 32, 32, 10

    key = jax.random.PRNGKey(0)
    kx, kp = jax.random.split(key)
    x = jax.random.normal(kx, (B, T, I), dtype=jnp.float32)
    params = init_params(kp, I, LPFF, H, C)

    out = small_lprnn_forward(x, params)
    out = jax.block_until_ready(out)

    ref = small_lprnn_reference(x, params)
    assert out.shape == (B, T, C), out.shape
    assert jnp.allclose(out, ref, atol=1e-4, rtol=1e-4), "mismatch vs reference"

    print("KERNEL_OK")
</pallas_src>

<mosaic_0001>
module attributes {stable_mosaic.version = 11 : i64} {
  func.func @_lprnn_kernel(%arg0: memref<2x8x16xf32, #tpu.memory_space<vmem>>, %arg1: memref<16x32xf32, #tpu.memory_space<vmem>>, %arg2: memref<1x32xf32, #tpu.memory_space<vmem>>, %arg3: memref<64x32xf32, #tpu.memory_space<vmem>>, %arg4: memref<1x32xf32, #tpu.memory_space<vmem>>, %arg5: memref<64x32xf32, #tpu.memory_space<vmem>>, %arg6: memref<1x32xf32, #tpu.memory_space<vmem>>, %arg7: memref<32x10xf32, #tpu.memory_space<vmem>>, %arg8: memref<1x10xf32, #tpu.memory_space<vmem>>, %arg9: memref<2x8x10xf32, #tpu.memory_space<vmem>>, %arg10: memref<2x8x32xf32, #tpu.memory_space<vmem>>) attributes {dimension_semantics = [], scalar_prefetch = 0 : i64, scratch_operands = 1 : i64, tpu.core_type = #tpu.core_type<tc>} {
    %c0 = arith.constant 0 : index
    %c0_0 = arith.constant 0 : index
    %c0_1 = arith.constant 0 : index
    %0 = vector.load %arg0[%c0, %c0_0, %c0_1] : memref<2x8x16xf32, #tpu.memory_space<vmem>>, vector<2x8x16xf32>
    %1 = vector.shape_cast %0 : vector<2x8x16xf32> to vector<16x16xf32>
    %c0_2 = arith.constant 0 : index
    %c0_3 = arith.constant 0 : index
    %2 = vector.load %arg1[%c0_2, %c0_3] : memref<16x32xf32, #tpu.memory_space<vmem>>, vector<16x32xf32>
    %cst = arith.constant dense<0.000000e+00> : vector<16x32xf32>
    %3 = tpu.matmul %1, %2, %cst {dimension_numbers = #tpu.dot_dimension_numbers<[1], [0], [0], [1], [0, 0, 1, 1], [], []>} : vector<16x16xf32>, vector<16x32xf32>, vector<16x32xf32> -> vector<16x32xf32>
    %c0_4 = arith.constant 0 : index
    %c0_5 = arith.constant 0 : index
    %4 = vector.load %arg2[%c0_4, %c0_5] : memref<1x32xf32, #tpu.memory_space<vmem>>, vector<1x32xf32>
    %5 = vector.broadcast %4 : vector<1x32xf32> to vector<16x32xf32>
    %6 = arith.addf %3, %5 : vector<16x32xf32>
    %cst_6 = arith.constant 0.000000e+00 : f32
    %cst_7 = arith.constant 6.000000e+00 : f32
    %7 = vector.broadcast %cst_6 : f32 to vector<16x32xf32>
    %8 = arith.maximumf %7, %6 : vector<16x32xf32>
    %9 = vector.broadcast %cst_7 : f32 to vector<16x32xf32>
    %10 = arith.minimumf %9, %8 : vector<16x32xf32>
    %11 = vector.shape_cast %10 : vector<16x32xf32> to vector<2x8x32xf32>
    %c0_8 = arith.constant 0 : index
    %c0_9 = arith.constant 0 : index
    %12 = vector.load %arg3[%c0_8, %c0_9] : memref<64x32xf32, #tpu.memory_space<vmem>>, vector<64x32xf32>
    %c0_10 = arith.constant 0 : index
    %c0_11 = arith.constant 0 : index
    %13 = vector.load %arg5[%c0_10, %c0_11] : memref<64x32xf32, #tpu.memory_space<vmem>>, vector<64x32xf32>
    %c0_12 = arith.constant 0 : index
    %c0_13 = arith.constant 0 : index
    %14 = vector.load %arg4[%c0_12, %c0_13] : memref<1x32xf32, #tpu.memory_space<vmem>>, vector<1x32xf32>
    %15 = vector.shape_cast %14 : vector<1x32xf32> to vector<1x32xf32>
    %16 = vector.broadcast %15 : vector<1x32xf32> to vector<2x32xf32>
    %c0_14 = arith.constant 0 : index
    %c0_15 = arith.constant 0 : index
    %17 = vector.load %arg6[%c0_14, %c0_15] : memref<1x32xf32, #tpu.memory_space<vmem>>, vector<1x32xf32>
    %18 = vector.shape_cast %17 : vector<1x32xf32> to vector<1x32xf32>
    %19 = vector.broadcast %18 : vector<1x32xf32> to vector<2x32xf32>
    %cst_16 = arith.constant 0.000000e+00 : f32
    %20 = vector.broadcast %cst_16 : f32 to vector<2x32xf32>
    %cst_17 = arith.constant 0.000000e+00 : f32
    %21 = vector.broadcast %cst_17 : f32 to vector<2x32xf32>
    %cst_18 = arith.constant 0.000000e+00 : f32
    %22 = vector.broadcast %cst_18 : f32 to vector<2x32xf32>
    %cst_19 = arith.constant 8.000000e-01 : f32
    %23 = vector.broadcast %cst_19 : f32 to vector<2x32xf32>
    %24 = arith.mulf %23, %20 : vector<2x32xf32>
    %25 = vector.extract_strided_slice %11 {offsets = [0, 0, 0], sizes = [2, 1, 32], strides = [1, 1, 1]} : vector<2x8x32xf32> to vector<2x1x32xf32>
    %26 = vector.shape_cast %25 : vector<2x1x32xf32> to vector<2x32xf32>
    %cst_20 = arith.constant 2.000000e-01 : f32
    %27 = vector.broadcast %cst_20 : f32 to vector<2x32xf32>
    %28 = arith.mulf %27, %26 : vector<2x32xf32>
    %29 = arith.addf %24, %28 : vector<2x32xf32>
    %30 = tpu.concatenate %29, %21 in 1 : vector<2x32xf32>, vector<2x32xf32> -> vector<2x64xf32>
    %cst_21 = arith.constant dense<0.000000e+00> : vector<2x32xf32>
    %31 = tpu.matmul %30, %12, %cst_21 {dimension_numbers = #tpu.dot_dimension_numbers<[1], [0], [0], [1], [0, 0, 1, 1], [], []>} : vector<2x64xf32>, vector<64x32xf32>, vector<2x32xf32> -> vector<2x32xf32>
    %32 = arith.addf %31, %16 : vector<2x32xf32>
    %cst_22 = arith.constant 8.000000e-01 : f32
    %33 = vector.broadcast %cst_22 : f32 to vector<2x32xf32>
    %34 = arith.mulf %33, %21 : vector<2x32xf32>
    %cst_23 = arith.constant 0.000000e+00 : f32
    %cst_24 = arith.constant 6.000000e+00 : f32
    %35 = vector.broadcast %cst_23 : f32 to vector<2x32xf32>
    %36 = arith.maximumf %35, %32 : vector<2x32xf32>
    %37 = vector.broadcast %cst_24 : f32 to vector<2x32xf32>
    %38 = arith.minimumf %37, %36 : vector<2x32xf32>
    %cst_25 = arith.constant 2.000000e-01 : f32
    %39 = vector.broadcast %cst_25 : f32 to vector<2x32xf32>
    %40 = arith.mulf %39, %38 : vector<2x32xf32>
    %41 = arith.addf %34, %40 : vector<2x32xf32>
    %42 = tpu.concatenate %41, %22 in 1 : vector<2x32xf32>, vector<2x32xf32> -> vector<2x64xf32>
    %cst_26 = arith.constant dense<0.000000e+00> : vector<2x32xf32>
    %43 = tpu.matmul %42, %13, %cst_26 {dimension_numbers = #tpu.dot_dimension_numbers<[1], [0], [0], [1], [0, 0, 1, 1], [], []>} : vector<2x64xf32>, vector<64x32xf32>, vector<2x32xf32> -> vector<2x32xf32>
    %44 = arith.addf %43, %19 : vector<2x32xf32>
    %cst_27 = arith.constant 8.000000e-01 : f32
    %45 = vector.broadcast %cst_27 : f32 to vector<2x32xf32>
    %46 = arith.mulf %45, %22 : vector<2x32xf32>
    %cst_28 = arith.constant 0.000000e+00 : f32
    %cst_29 = arith.constant 6.000000e+00 : f32
    %47 = vector.broadcast %cst_28 : f32 to vector<2x32xf32>
    %48 = arith.maximumf %47, %44 : vector<2x32xf32>
    %49 = vector.broadcast %cst_29 : f32 to vector<2x32xf32>
    %50 = arith.minimumf %49, %48 : vector<2x32xf32>
    %cst_30 = arith.constant 2.000000e-01 : f32
    %51 = vector.broadcast %cst_30 : f32 to vector<2x32xf32>
    %52 = arith.mulf %51, %50 : vector<2x32xf32>
    %53 = arith.addf %46, %52 : vector<2x32xf32>
    %c0_31 = arith.constant 0 : index
    %c0_32 = arith.constant 0 : index
    %c0_33 = arith.constant 0 : index
    %54 = vector.load %arg10[%c0_31, %c0_32, %c0_33] : memref<2x8x32xf32, #tpu.memory_space<vmem>>, vector<2x1x32xf32>
    %55 = vector.shape_cast %54 : vector<2x1x32xf32> to vector<2x32xf32>
    %56 = vector.shape_cast %53 : vector<2x32xf32> to vector<2x1x32xf32>
    tpu.vector_store %arg10[%c0_31, %c0_32, %c0_33], %56 {strides = array<i32>} : memref<2x8x32xf32, #tpu.memory_space<vmem>>, vector<2x1x32xf32>,
    %cst_34 = arith.constant 8.000000e-01 : f32
    %57 = vector.broadcast %cst_34 : f32 to vector<2x32xf32>
    %58 = arith.mulf %57, %29 : vector<2x32xf32>
    %59 = vector.extract_strided_slice %11 {offsets = [0, 1, 0], sizes = [2, 1, 32], strides = [1, 1, 1]} : vector<2x8x32xf32> to vector<2x1x32xf32>
    %60 = vector.shape_cast %59 : vector<2x1x32xf32> to vector<2x32xf32>
    %cst_35 = arith.constant 2.000000e-01 : f32
    %61 = vector.broadcast %cst_35 : f32 to vector<2x32xf32>
    %62 = arith.mulf %61, %60 : vector<2x32xf32>
    %63 = arith.addf %58, %62 : vector<2x32xf32>
    %64 = tpu.concatenate %63, %41 in 1 : vector<2x32xf32>, vector<2x32xf32> -> vector<2x64xf32>
    %cst_36 = arith.constant dense<0.000000e+00> : vector<2x32xf32>
    %65 = tpu.matmul %64, %12, %cst_36 {dimension_numbers = #tpu.dot_dimension_numbers<[1], [0], [0], [1], [0, 0, 1, 1], [], []>} : vector<2x64xf32>, vector<64x32xf32>, vector<2x32xf32> -> vector<2x32xf32>
    %66 = arith.addf %65, %16 : vector<2x32xf32>
    %cst_37 = arith.constant 8.000000e-01 : f32
    %67 = vector.broadcast %cst_37 : f32 to vector<2x32xf32>
    %68 = arith.mulf %67, %41 : vector<2x32xf32>
    %cst_38 = arith.constant 0.000000e+00 : f32
    %cst_39 = arith.constant 6.000000e+00 : f32
    %69 = vector.broadcast %cst_38 : f32 to vector<2x32xf32>
    %70 = arith.maximumf %69, %66 : vector<2x32xf32>
    %71 = vector.broadcast %cst_39 : f32 to vector<2x32xf32>
    %72 = arith.minimumf %71, %70 : vector<2x32xf32>
    %cst_40 = arith.constant 2.000000e-01 : f32
    %73 = vector.broadcast %cst_40 : f32 to vector<2x32xf32>
    %74 = arith.mulf %73, %72 : vector<2x32xf32>
    %75 = arith.addf %68, %74 : vector<2x32xf32>
    %76 = tpu.concatenate %75, %53 in 1 : vector<2x32xf32>, vector<2x32xf32> -> vector<2x64xf32>
    %cst_41 = arith.constant dense<0.000000e+00> : vector<2x32xf32>
    %77 = tpu.matmul %76, %13, %cst_41 {dimension_numbers = #tpu.dot_dimension_numbers<[1], [0], [0], [1], [0, 0, 1, 1], [], []>} : vector<2x64xf32>, vector<64x32xf32>, vector<2x32xf32> -> vector<2x32xf32>
    %78 = arith.addf %77, %19 : vector<2x32xf32>
    %cst_42 = arith.constant 8.000000e-01 : f32
    %79 = vector.broadcast %cst_42 : f32 to vector<2x32xf32>
    %80 = arith.mulf %79, %53 : vector<2x32xf32>
    %cst_43 = arith.constant 0.000000e+00 : f32
    %cst_44 = arith.constant 6.000000e+00 : f32
    %81 = vector.broadcast %cst_43 : f32 to vector<2x32xf32>
    %82 = arith.maximumf %81, %78 : vector<2x32xf32>
    %83 = vector.broadcast %cst_44 : f32 to vector<2x32xf32>
    %84 = arith.minimumf %83, %82 : vector<2x32xf32>
    %cst_45 = arith.constant 2.000000e-01 : f32
    %85 = vector.broadcast %cst_45 : f32 to vector<2x32xf32>
    %86 = arith.mulf %85, %84 : vector<2x32xf32>
    %87 = arith.addf %80, %86 : vector<2x32xf32>
    %c0_46 = arith.constant 0 : index
    %c1 = arith.constant 1 : index
    %c0_47 = arith.constant 0 : index
    %88 = vector.load %arg10[%c0_46, %c1, %c0_47] : memref<2x8x32xf32, #tpu.memory_space<vmem>>, vector<2x1x32xf32>
    %89 = vector.shape_cast %88 : vector<2x1x32xf32> to vector<2x32xf32>
    %90 = vector.shape_cast %87 : vector<2x32xf32> to vector<2x1x32xf32>
    tpu.vector_store %arg10[%c0_46, %c1, %c0_47], %90 {strides = array<i32>} : memref<2x8x32xf32, #tpu.memory_space<vmem>>, vector<2x1x32xf32>,
    %cst_48 = arith.constant 8.000000e-01 : f32
    %91 = vector.broadcast %cst_48 : f32 to vector<2x32xf32>
    %92 = arith.mulf %91, %63 : vector<2x32xf32>
    %93 = vector.extract_strided_slice %11 {offsets = [0, 2, 0], sizes = [2, 1, 32], strides = [1, 1, 1]} : vector<2x8x32xf32> to vector<2x1x32xf32>
    %94 = vector.shape_cast %93 : vector<2x1x32xf32> to vector<2x32xf32>
    %cst_49 = arith.constant 2.000000e-01 : f32
    %95 = vector.broadcast %cst_49 : f32 to vector<2x32xf32>
    %96 = arith.mulf %95, %94 : vector<2x32xf32>
    %97 = arith.addf %92, %96 : vector<2x32xf32>
    %98 = tpu.concatenate %97, %75 in 1 : vector<2x32xf32>, vector<2x32xf32> -> vector<2x64xf32>
    %cst_50 = arith.constant dense<0.000000e+00> : vector<2x32xf32>
    %99 = tpu.matmul %98, %12, %cst_50 {dimension_numbers = #tpu.dot_dimension_numbers<[1], [0], [0], [1], [0, 0, 1, 1], [], []>} : vector<2x64xf32>, vector<64x32xf32>, vector<2x32xf32> -> vector<2x32xf32>
    %100 = arith.addf %99, %16 : vector<2x32xf32>
    %cst_51 = arith.constant 8.000000e-01 : f32
    %101 = vector.broadcast %cst_51 : f32 to vector<2x32xf32>
    %102 = arith.mulf %101, %75 : vector<2x32xf32>
    %cst_52 = arith.constant 0.000000e+00 : f32
    %cst_53 = arith.constant 6.000000e+00 : f32
    %103 = vector.broadcast %cst_52 : f32 to vector<2x32xf32>
    %104 = arith.maximumf %103, %100 : vector<2x32xf32>
    %105 = vector.broadcast %cst_53 : f32 to vector<2x32xf32>
    %106 = arith.minimumf %105, %104 : vector<2x32xf32>
    %cst_54 = arith.constant 2.000000e-01 : f32
    %107 = vector.broadcast %cst_54 : f32 to vector<2x32xf32>
    %108 = arith.mulf %107, %106 : vector<2x32xf32>
    %109 = arith.addf %102, %108 : vector<2x32xf32>
    %110 = tpu.concatenate %109, %87 in 1 : vector<2x32xf32>, vector<2x32xf32> -> vector<2x64xf32>
    %cst_55 = arith.constant dense<0.000000e+00> : vector<2x32xf32>
    %111 = tpu.matmul %110, %13, %cst_55 {dimension_numbers = #tpu.dot_dimension_numbers<[1], [0], [0], [1], [0, 0, 1, 1], [], []>} : vector<2x64xf32>, vector<64x32xf32>, vector<2x32xf32> -> vector<2x32xf32>
    %112 = arith.addf %111, %19 : vector<2x32xf32>
    %cst_56 = arith.constant 8.000000e-01 : f32
    %113 = vector.broadcast %cst_56 : f32 to vector<2x32xf32>
    %114 = arith.mulf %113, %87 : vector<2x32xf32>
    %cst_57 = arith.constant 0.000000e+00 : f32
    %cst_58 = arith.constant 6.000000e+00 : f32
    %115 = vector.broadcast %cst_57 : f32 to vector<2x32xf32>
    %116 = arith.maximumf %115, %112 : vector<2x32xf32>
    %117 = vector.broadcast %cst_58 : f32 to vector<2x32xf32>
    %118 = arith.minimumf %117, %116 : vector<2x32xf32>
    %cst_59 = arith.constant 2.000000e-01 : f32
    %119 = vector.broadcast %cst_59 : f32 to vector<2x32xf32>
    %120 = arith.mulf %119, %118 : vector<2x32xf32>
    %121 = arith.addf %114, %120 : vector<2x32xf32>
    %c0_60 = arith.constant 0 : index
    %c2 = arith.constant 2 : index
    %c0_61 = arith.constant 0 : index
    %122 = vector.load %arg10[%c0_60, %c2, %c0_61] : memref<2x8x32xf32, #tpu.memory_space<vmem>>, vector<2x1x32xf32>
    %123 = vector.shape_cast %122 : vector<2x1x32xf32> to vector<2x32xf32>
    %124 = vector.shape_cast %121 : vector<2x32xf32> to vector<2x1x32xf32>
    tpu.vector_store %arg10[%c0_60, %c2, %c0_61], %124 {strides = array<i32>} : memref<2x8x32xf32, #tpu.memory_space<vmem>>, vector<2x1x32xf32>,
    %cst_62 = arith.constant 8.000000e-01 : f32
    %125 = vector.broadcast %cst_62 : f32 to vector<2x32xf32>
    %126 = arith.mulf %125, %97 : vector<2x32xf32>
    %127 = vector.extract_strided_slice %11 {offsets = [0, 3, 0], sizes = [2, 1, 32], strides = [1, 1, 1]} : vector<2x8x32xf32> to vector<2x1x32xf32>
    %128 = vector.shape_cast %127 : vector<2x1x32xf32> to vector<2x32xf32>
    %cst_63 = arith.constant 2.000000e-01 : f32
    %129 = vector.broadcast %cst_63 : f32 to vector<2x32xf32>
    %130 = arith.mulf %129, %128 : vector<2x32xf32>
    %131 = arith.addf %126, %130 : vector<2x32xf32>
    %132 = tpu.concatenate %131, %109 in 1 : vector<2x32xf32>, vector<2x32xf32> -> vector<2x64xf32>
    %cst_64 = arith.constant dense<0.000000e+00> : vector<2x32xf32>
    %133 = tpu.matmul %132, %12, %cst_64 {dimension_numbers = #tpu.dot_dimension_numbers<[1], [0], [0], [1], [0, 0, 1, 1], [], []>} : vector<2x64xf32>, vector<64x32xf32>, vector<2x32xf32> -> vector<2x32xf32>
    %134 = arith.addf %133, %16 : vector<2x32xf32>
    %cst_65 = arith.constant 8.000000e-01 : f32
    %135 = vector.broadcast %cst_65 : f32 to vector<2x32xf32>
    %136 = arith.mulf %135, %109 : vector<2x32xf32>
    %cst_66 = arith.constant 0.000000e+00 : f32
    %cst_67 = arith.constant 6.000000e+00 : f32
    %137 = vector.broadcast %cst_66 : f32 to vector<2x32xf32>
    %138 = arith.maximumf %137, %134 : vector<2x32xf32>
    %139 = vector.broadcast %cst_67 : f32 to vector<2x32xf32>
    %140 = arith.minimumf %139, %138 : vector<2x32xf32>
    %cst_68 = arith.constant 2.000000e-01 : f32
    %141 = vector.broadcast %cst_68 : f32 to vector<2x32xf32>
    %142 = arith.mulf %141, %140 : vector<2x32xf32>
    %143 = arith.addf %136, %142 : vector<2x32xf32>
    %144 = tpu.concatenate %143, %121 in 1 : vector<2x32xf32>, vector<2x32xf32> -> vector<2x64xf32>
    %cst_69 = arith.constant dense<0.000000e+00> : vector<2x32xf32>
    %145 = tpu.matmul %144, %13, %cst_69 {dimension_numbers = #tpu.dot_dimension_numbers<[1], [0], [0], [1], [0, 0, 1, 1], [], []>} : vector<2x64xf32>, vector<64x32xf32>, vector<2x32xf32> -> vector<2x32xf32>
    %146 = arith.addf %145, %19 : vector<2x32xf32>
    %cst_70 = arith.constant 8.000000e-01 : f32
    %147 = vector.broadcast %cst_70 : f32 to vector<2x32xf32>
    %148 = arith.mulf %147, %121 : vector<2x32xf32>
    %cst_71 = arith.constant 0.000000e+00 : f32
    %cst_72 = arith.constant 6.000000e+00 : f32
    %149 = vector.broadcast %cst_71 : f32 to vector<2x32xf32>
    %150 = arith.maximumf %149, %146 : vector<2x32xf32>
    %151 = vector.broadcast %cst_72 : f32 to vector<2x32xf32>
    %152 = arith.minimumf %151, %150 : vector<2x32xf32>
    %cst_73 = arith.constant 2.000000e-01 : f32
    %153 = vector.broadcast %cst_73 : f32 to vector<2x32xf32>
    %154 = arith.mulf %153, %152 : vector<2x32xf32>
    %155 = arith.addf %148, %154 : vector<2x32xf32>
    %c0_74 = arith.constant 0 : index
    %c3 = arith.constant 3 : index
    %c0_75 = arith.constant 0 : index
    %156 = vector.load %arg10[%c0_74, %c3, %c0_75] : memref<2x8x32xf32, #tpu.memory_space<vmem>>, vector<2x1x32xf32>
    %157 = vector.shape_cast %156 : vector<2x1x32xf32> to vector<2x32xf32>
    %158 = vector.shape_cast %155 : vector<2x32xf32> to vector<2x1x32xf32>
    tpu.vector_store %arg10[%c0_74, %c3, %c0_75], %158 {strides = array<i32>} : memref<2x8x32xf32, #tpu.memory_space<vmem>>, vector<2x1x32xf32>,
    %cst_76 = arith.constant 8.000000e-01 : f32
    %159 = vector.broadcast %cst_76 : f32 to vector<2x32xf32>
    %160 = arith.mulf %159, %131 : vector<2x32xf32>
    %161 = vector.extract_strided_slice %11 {offsets = [0, 4, 0], sizes = [2, 1, 32], strides = [1, 1, 1]} : vector<2x8x32xf32> to vector<2x1x32xf32>
    %162 = vector.shape_cast %161 : vector<2x1x32xf32> to vector<2x32xf32>
    %cst_77 = arith.constant 2.000000e-01 : f32
    %163 = vector.broadcast %cst_77 : f32 to vector<2x32xf32>
    %164 = arith.mulf %163, %162 : vector<2x32xf32>
    %165 = arith.addf %160, %164 : vector<2x32xf32>
    %166 = tpu.concatenate %165, %143 in 1 : vector<2x32xf32>, vector<2x32xf32> -> vector<2x64xf32>
    %cst_78 = arith.constant dense<0.000000e+00> : vector<2x32xf32>
    %167 = tpu.matmul %166, %12, %cst_78 {dimension_numbers = #tpu.dot_dimension_numbers<[1], [0], [0], [1], [0, 0, 1, 1], [], []>} : vector<2x64xf32>, vector<64x32xf32>, vector<2x32xf32> -> vector<2x32xf32>
    %168 = arith.addf %167, %16 : vector<2x32xf32>
    %cst_79 = arith.constant 8.000000e-01 : f32
    %169 = vector.broadcast %cst_79 : f32 to vector<2x32xf32>
    %170 = arith.mulf %169, %143 : vector<2x32xf32>
    %cst_80 = arith.constant 0.000000e+00 : f32
    %cst_81 = arith.constant 6.000000e+00 : f32
    %171 = vector.broadcast %cst_80 : f32 to vector<2x32xf32>
    %172 = arith.maximumf %171, %168 : vector<2x32xf32>
    %173 = vector.broadcast %cst_81 : f32 to vector<2x32xf32>
    %174 = arith.minimumf %173, %172 : vector<2x32xf32>
    %cst_82 = arith.constant 2.000000e-01 : f32
    %175 = vector.broadcast %cst_82 : f32 to vector<2x32xf32>
    %176 = arith.mulf %175, %174 : vector<2x32xf32>
    %177 = arith.addf %170, %176 : vector<2x32xf32>
    %178 = tpu.concatenate %177, %155 in 1 : vector<2x32xf32>, vector<2x32xf32> -> vector<2x64xf32>
    %cst_83 = arith.constant dense<0.000000e+00> : vector<2x32xf32>
    %179 = tpu.matmul %178, %13, %cst_83 {dimension_numbers = #tpu.dot_dimension_numbers<[1], [0], [0], [1], [0, 0, 1, 1], [], []>} : vector<2x64xf32>, vector<64x32xf32>, vector<2x32xf32> -> vector<2x32xf32>
    %180 = arith.addf %179, %19 : vector<2x32xf32>
    %cst_84 = arith.constant 8.000000e-01 : f32
    %181 = vector.broadcast %cst_84 : f32 to vector<2x32xf32>
    %182 = arith.mulf %181, %155 : vector<2x32xf32>
    %cst_85 = arith.constant 0.000000e+00 : f32
    %cst_86 = arith.constant 6.000000e+00 : f32
    %183 = vector.broadcast %cst_85 : f32 to vector<2x32xf32>
    %184 = arith.maximumf %183, %180 : vector<2x32xf32>
    %185 = vector.broadcast %cst_86 : f32 to vector<2x32xf32>
    %186 = arith.minimumf %185, %184 : vector<2x32xf32>
    %cst_87 = arith.constant 2.000000e-01 : f32
    %187 = vector.broadcast %cst_87 : f32 to vector<2x32xf32>
    %188 = arith.mulf %187, %186 : vector<2x32xf32>
    %189 = arith.addf %182, %188 : vector<2x32xf32>
    %c0_88 = arith.constant 0 : index
    %c4 = arith.constant 4 : index
    %c0_89 = arith.constant 0 : index
    %190 = vector.load %arg10[%c0_88, %c4, %c0_89] : memref<2x8x32xf32, #tpu.memory_space<vmem>>, vector<2x1x32xf32>
    %191 = vector.shape_cast %190 : vector<2x1x32xf32> to vector<2x32xf32>
    %192 = vector.shape_cast %189 : vector<2x32xf32> to vector<2x1x32xf32>
    tpu.vector_store %arg10[%c0_88, %c4, %c0_89], %192 {strides = array<i32>} : memref<2x8x32xf32, #tpu.memory_space<vmem>>, vector<2x1x32xf32>,
    %cst_90 = arith.constant 8.000000e-01 : f32
    %193 = vector.broadcast %cst_90 : f32 to vector<2x32xf32>
    %194 = arith.mulf %193, %165 : vector<2x32xf32>
    %195 = vector.extract_strided_slice %11 {offsets = [0, 5, 0], sizes = [2, 1, 32], strides = [1, 1, 1]} : vector<2x8x32xf32> to vector<2x1x32xf32>
    %196 = vector.shape_cast %195 : vector<2x1x32xf32> to vector<2x32xf32>
    %cst_91 = arith.constant 2.000000e-01 : f32
    %197 = vector.broadcast %cst_91 : f32 to vector<2x32xf32>
    %198 = arith.mulf %197, %196 : vector<2x32xf32>
    %199 = arith.addf %194, %198 : vector<2x32xf32>
    %200 = tpu.concatenate %199, %177 in 1 : vector<2x32xf32>, vector<2x32xf32> -> vector<2x64xf32>
    %cst_92 = arith.constant dense<0.000000e+00> : vector<2x32xf32>
    %201 = tpu.matmul %200, %12, %cst_92 {dimension_numbers = #tpu.dot_dimension_numbers<[1], [0], [0], [1], [0, 0, 1, 1], [], []>} : vector<2x64xf32>, vector<64x32xf32>, vector<2x32xf32> -> vector<2x32xf32>
    %202 = arith.addf %201, %16 : vector<2x32xf32>
    %cst_93 = arith.constant 8.000000e-01 : f32
    %203 = vector.broadcast %cst_93 : f32 to vector<2x32xf32>
    %204 = arith.mulf %203, %177 : vector<2x32xf32>
    %cst_94 = arith.constant 0.000000e+00 : f32
    %cst_95 = arith.constant 6.000000e+00 : f32
    %205 = vector.broadcast %cst_94 : f32 to vector<2x32xf32>
    %206 = arith.maximumf %205, %202 : vector<2x32xf32>
    %207 = vector.broadcast %cst_95 : f32 to vector<2x32xf32>
    %208 = arith.minimumf %207, %206 : vector<2x32xf32>
    %cst_96 = arith.constant 2.000000e-01 : f32
    %209 = vector.broadcast %cst_96 : f32 to vector<2x32xf32>
    %210 = arith.mulf %209, %208 : vector<2x32xf32>
    %211 = arith.addf %204, %210 : vector<2x32xf32>
    %212 = tpu.concatenate %211, %189 in 1 : vector<2x32xf32>, vector<2x32xf32> -> vector<2x64xf32>
    %cst_97 = arith.constant dense<0.000000e+00> : vector<2x32xf32>
    %213 = tpu.matmul %212, %13, %cst_97 {dimension_numbers = #tpu.dot_dimension_numbers<[1], [0], [0], [1], [0, 0, 1, 1], [], []>} : vector<2x64xf32>, vector<64x32xf32>, vector<2x32xf32> -> vector<2x32xf32>
    %214 = arith.addf %213, %19 : vector<2x32xf32>
    %cst_98 = arith.constant 8.000000e-01 : f32
    %215 = vector.broadcast %cst_98 : f32 to vector<2x32xf32>
    %216 = arith.mulf %215, %189 : vector<2x32xf32>
    %cst_99 = arith.constant 0.000000e+00 : f32
    %cst_100 = arith.constant 6.000000e+00 : f32
    %217 = vector.broadcast %cst_99 : f32 to vector<2x32xf32>
    %218 = arith.maximumf %217, %214 : vector<2x32xf32>
    %219 = vector.broadcast %cst_100 : f32 to vector<2x32xf32>
    %220 = arith.minimumf %219, %218 : vector<2x32xf32>
    %cst_101 = arith.constant 2.000000e-01 : f32
    %221 = vector.broadcast %cst_101 : f32 to vector<2x32xf32>
    %222 = arith.mulf %221, %220 : vector<2x32xf32>
    %223 = arith.addf %216, %222 : vector<2x32xf32>
    %c0_102 = arith.constant 0 : index
    %c5 = arith.constant 5 : index
    %c0_103 = arith.constant 0 : index
    %224 = vector.load %arg10[%c0_102, %c5, %c0_103] : memref<2x8x32xf32, #tpu.memory_space<vmem>>, vector<2x1x32xf32>
    %225 = vector.shape_cast %224 : vector<2x1x32xf32> to vector<2x32xf32>
    %226 = vector.shape_cast %223 : vector<2x32xf32> to vector<2x1x32xf32>
    tpu.vector_store %arg10[%c0_102, %c5, %c0_103], %226 {strides = array<i32>} : memref<2x8x32xf32, #tpu.memory_space<vmem>>, vector<2x1x32xf32>,
    %cst_104 = arith.constant 8.000000e-01 : f32
    %227 = vector.broadcast %cst_104 : f32 to vector<2x32xf32>
    %228 = arith.mulf %227, %199 : vector<2x32xf32>
    %229 = vector.extract_strided_slice %11 {offsets = [0, 6, 0], sizes = [2, 1, 32], strides = [1, 1, 1]} : vector<2x8x32xf32> to vector<2x1x32xf32>
    %230 = vector.shape_cast %229 : vector<2x1x32xf32> to vector<2x32xf32>
    %cst_105 = arith.constant 2.000000e-01 : f32
    %231 = vector.broadcast %cst_105 : f32 to vector<2x32xf32>
    %232 = arith.mulf %231, %230 : vector<2x32xf32>
    %233 = arith.addf %228, %232 : vector<2x32xf32>
    %234 = tpu.concatenate %233, %211 in 1 : vector<2x32xf32>, vector<2x32xf32> -> vector<2x64xf32>
    %cst_106 = arith.constant dense<0.000000e+00> : vector<2x32xf32>
    %235 = tpu.matmul %234, %12, %cst_106 {dimension_numbers = #tpu.dot_dimension_numbers<[1], [0], [0], [1], [0, 0, 1, 1], [], []>} : vector<2x64xf32>, vector<64x32xf32>, vector<2x32xf32> -> vector<2x32xf32>
    %236 = arith.addf %235, %16 : vector<2x32xf32>
    %cst_107 = arith.constant 8.000000e-01 : f32
    %237 = vector.broadcast %cst_107 : f32 to vector<2x32xf32>
    %238 = arith.mulf %237, %211 : vector<2x32xf32>
    %cst_108 = arith.constant 0.000000e+00 : f32
    %cst_109 = arith.constant 6.000000e+00 : f32
    %239 = vector.broadcast %cst_108 : f32 to vector<2x32xf32>
    %240 = arith.maximumf %239, %236 : vector<2x32xf32>
    %241 = vector.broadcast %cst_109 : f32 to vector<2x32xf32>
    %242 = arith.minimumf %241, %240 : vector<2x32xf32>
    %cst_110 = arith.constant 2.000000e-01 : f32
    %243 = vector.broadcast %cst_110 : f32 to vector<2x32xf32>
    %244 = arith.mulf %243, %242 : vector<2x32xf32>
    %245 = arith.addf %238, %244 : vector<2x32xf32>
    %246 = tpu.concatenate %245, %223 in 1 : vector<2x32xf32>, vector<2x32xf32> -> vector<2x64xf32>
    %cst_111 = arith.constant dense<0.000000e+00> : vector<2x32xf32>
    %247 = tpu.matmul %246, %13, %cst_111 {dimension_numbers = #tpu.dot_dimension_numbers<[1], [0], [0], [1], [0, 0, 1, 1], [], []>} : vector<2x64xf32>, vector<64x32xf32>, vector<2x32xf32> -> vector<2x32xf32>
    %248 = arith.addf %247, %19 : vector<2x32xf32>
    %cst_112 = arith.constant 8.000000e-01 : f32
    %249 = vector.broadcast %cst_112 : f32 to vector<2x32xf32>
    %250 = arith.mulf %249, %223 : vector<2x32xf32>
    %cst_113 = arith.constant 0.000000e+00 : f32
    %cst_114 = arith.constant 6.000000e+00 : f32
    %251 = vector.broadcast %cst_113 : f32 to vector<2x32xf32>
    %252 = arith.maximumf %251, %248 : vector<2x32xf32>
    %253 = vector.broadcast %cst_114 : f32 to vector<2x32xf32>
    %254 = arith.minimumf %253, %252 : vector<2x32xf32>
    %cst_115 = arith.constant 2.000000e-01 : f32
    %255 = vector.broadcast %cst_115 : f32 to vector<2x32xf32>
    %256 = arith.mulf %255, %254 : vector<2x32xf32>
    %257 = arith.addf %250, %256 : vector<2x32xf32>
    %c0_116 = arith.constant 0 : index
    %c6 = arith.constant 6 : index
    %c0_117 = arith.constant 0 : index
    %258 = vector.load %arg10[%c0_116, %c6, %c0_117] : memref<2x8x32xf32, #tpu.memory_space<vmem>>, vector<2x1x32xf32>
    %259 = vector.shape_cast %258 : vector<2x1x32xf32> to vector<2x32xf32>
    %260 = vector.shape_cast %257 : vector<2x32xf32> to vector<2x1x32xf32>
    tpu.vector_store %arg10[%c0_116, %c6, %c0_117], %260 {strides = array<i32>} : memref<2x8x32xf32, #tpu.memory_space<vmem>>, vector<2x1x32xf32>,
    %cst_118 = arith.constant 8.000000e-01 : f32
    %261 = vector.broadcast %cst_118 : f32 to vector<2x32xf32>
    %262 = arith.mulf %261, %233 : vector<2x32xf32>
    %263 = vector.extract_strided_slice %11 {offsets = [0, 7, 0], sizes = [2, 1, 32], strides = [1, 1, 1]} : vector<2x8x32xf32> to vector<2x1x32xf32>
    %264 = vector.shape_cast %263 : vector<2x1x32xf32> to vector<2x32xf32>
    %cst_119 = arith.constant 2.000000e-01 : f32
    %265 = vector.broadcast %cst_119 : f32 to vector<2x32xf32>
    %266 = arith.mulf %265, %264 : vector<2x32xf32>
    %267 = arith.addf %262, %266 : vector<2x32xf32>
    %268 = tpu.concatenate %267, %245 in 1 : vector<2x32xf32>, vector<2x32xf32> -> vector<2x64xf32>
    %cst_120 = arith.constant dense<0.000000e+00> : vector<2x32xf32>
    %269 = tpu.matmul %268, %12, %cst_120 {dimension_numbers = #tpu.dot_dimension_numbers<[1], [0], [0], [1], [0, 0, 1, 1], [], []>} : vector<2x64xf32>, vector<64x32xf32>, vector<2x32xf32> -> vector<2x32xf32>
    %270 = arith.addf %269, %16 : vector<2x32xf32>
    %cst_121 = arith.constant 8.000000e-01 : f32
    %271 = vector.broadcast %cst_121 : f32 to vector<2x32xf32>
    %272 = arith.mulf %271, %245 : vector<2x32xf32>
    %cst_122 = arith.constant 0.000000e+00 : f32
    %cst_123 = arith.constant 6.000000e+00 : f32
    %273 = vector.broadcast %cst_122 : f32 to vector<2x32xf32>
    %274 = arith.maximumf %273, %270 : vector<2x32xf32>
    %275 = vector.broadcast %cst_123 : f32 to vector<2x32xf32>
    %276 = arith.minimumf %275, %274 : vector<2x32xf32>
    %cst_124 = arith.constant 2.000000e-01 : f32
    %277 = vector.broadcast %cst_124 : f32 to vector<2x32xf32>
    %278 = arith.mulf %277, %276 : vector<2x32xf32>
    %279 = arith.addf %272, %278 : vector<2x32xf32>
    %280 = tpu.concatenate %279, %257 in 1 : vector<2x32xf32>, vector<2x32xf32> -> vector<2x64xf32>
    %cst_125 = arith.constant dense<0.000000e+00> : vector<2x32xf32>
    %281 = tpu.matmul %280, %13, %cst_125 {dimension_numbers = #tpu.dot_dimension_numbers<[1], [0], [0], [1], [0, 0, 1, 1], [], []>} : vector<2x64xf32>, vector<64x32xf32>, vector<2x32xf32> -> vector<2x32xf32>
    %282 = arith.addf %281, %19 : vector<2x32xf32>
    %cst_126 = arith.constant 8.000000e-01 : f32
    %283 = vector.broadcast %cst_126 : f32 to vector<2x32xf32>
    %284 = arith.mulf %283, %257 : vector<2x32xf32>
    %cst_127 = arith.constant 0.000000e+00 : f32
    %cst_128 = arith.constant 6.000000e+00 : f32
    %285 = vector.broadcast %cst_127 : f32 to vector<2x32xf32>
    %286 = arith.maximumf %285, %282 : vector<2x32xf32>
    %287 = vector.broadcast %cst_128 : f32 to vector<2x32xf32>
    %288 = arith.minimumf %287, %286 : vector<2x32xf32>
    %cst_129 = arith.constant 2.000000e-01 : f32
    %289 = vector.broadcast %cst_129 : f32 to vector<2x32xf32>
    %290 = arith.mulf %289, %288 : vector<2x32xf32>
    %291 = arith.addf %284, %290 : vector<2x32xf32>
    %c0_130 = arith.constant 0 : index
    %c7 = arith.constant 7 : index
    %c0_131 = arith.constant 0 : index
    %292 = vector.load %arg10[%c0_130, %c7, %c0_131] : memref<2x8x32xf32, #tpu.memory_space<vmem>>, vector<2x1x32xf32>
    %293 = vector.shape_cast %292 : vector<2x1x32xf32> to vector<2x32xf32>
    %294 = vector.shape_cast %291 : vector<2x32xf32> to vector<2x1x32xf32>
    tpu.vector_store %arg10[%c0_130, %c7, %c0_131], %294 {strides = array<i32>} : memref<2x8x32xf32, #tpu.memory_space<vmem>>, vector<2x1x32xf32>,
    %c0_132 = arith.constant 0 : index
    %c0_133 = arith.constant 0 : index
    %c0_134 = arith.constant 0 : index
    %295 = vector.load %arg10[%c0_132, %c0_133, %c0_134] : memref<2x8x32xf32, #tpu.memory_space<vmem>>, vector<2x8x32xf32>
    %296 = vector.shape_cast %295 : vector<2x8x32xf32> to vector<16x32xf32>
    %c0_135 = arith.constant 0 : index
    %c0_136 = arith.constant 0 : index
    %297 = vector.load %arg7[%c0_135, %c0_136] : memref<32x10xf32, #tpu.memory_space<vmem>>, vector<32x10xf32>
    %cst_137 = arith.constant dense<0.000000e+00> : vector<16x10xf32>
    %298 = tpu.matmul %296, %297, %cst_137 {dimension_numbers = #tpu.dot_dimension_numbers<[1], [0], [0], [1], [0, 0, 1, 1], [], []>} : vector<16x32xf32>, vector<32x10xf32>, vector<16x10xf32> -> vector<16x10xf32>
    %c0_138 = arith.constant 0 : index
    %c0_139 = arith.constant 0 : index
    %299 = vector.load %arg8[%c0_138, %c0_139] : memref<1x10xf32, #tpu.memory_space<vmem>>, vector<1x10xf32>
    %300 = vector.broadcast %299 : vector<1x10xf32> to vector<16x10xf32>
    %301 = arith.addf %298, %300 : vector<16x10xf32>
    %302 = vector.shape_cast %301 : vector<16x10xf32> to vector<2x8x10xf32>
    %c0_140 = arith.constant 0 : index
    %c0_141 = arith.constant 0 : index
    %c0_142 = arith.constant 0 : index
    %303 = vector.load %arg9[%c0_140, %c0_141, %c0_142] : memref<2x8x10xf32, #tpu.memory_space<vmem>>, vector<2x8x10xf32>
    tpu.vector_store %arg9[%c0_140, %c0_141, %c0_142], %302 {strides = array<i32>} : memref<2x8x10xf32, #tpu.memory_space<vmem>>, vector<2x8x10xf32>,
    return
  }
}

</mosaic_0001>

<llo_original>
// kernel: small_lprnn_forward.1
$region0: #{small_lprnn_forward.1}
  #allocation0 [shape = 'u32[]', space=smem, size = 0x4, offset = 0x4, fixed_abs, tag = 'smem constant byte address 0x4 - core index']
  #allocation1 [shape = 'u32[144,128]{1,0:T(1,128)}', space=vmem, size = 0x12000, scoped, tag = 'internal scratch']
  #allocation2 [shape = 'f32[2,8,32]{2,1,0:T(8,128)}', space=vmem, size = 0x2000, scoped, tag = 'scratch operand']
  %s0 = inlined_call_operand.vmem [shape: f32[2,8,16], index: 0, kind: input, shape index: {}]
  %s1 = inlined_call_operand.vmem [shape: f32[16,32], index: 1, kind: input, shape index: {}]
  %s2 = inlined_call_operand.vmem [shape: f32[1,32], index: 2, kind: input, shape index: {}]
  %s3 = inlined_call_operand.vmem [shape: f32[64,32], index: 3, kind: input, shape index: {}]
  %s4 = inlined_call_operand.vmem [shape: f32[1,32], index: 4, kind: input, shape index: {}]
  %s5 = inlined_call_operand.vmem [shape: f32[64,32], index: 5, kind: input, shape index: {}]
  %s6 = inlined_call_operand.vmem [shape: f32[1,32], index: 6, kind: input, shape index: {}]
  %s7 = inlined_call_operand.vmem [shape: f32[32,10], index: 7, kind: input, shape index: {}]
  %s8 = inlined_call_operand.vmem [shape: f32[1,10], index: 8, kind: input, shape index: {}]
  %s9 = inlined_call_operand.hbm [shape: f32[2,8,10], index: 9, kind: output, shape index: {}]
  %s10 = sld [smem:[#allocation0]]
  $region46: #{small_lprnn_forward.1} parent=0
    _
  %s12 = ssub.s32 1, %s10
  %s13 = scalar_select 0, %s12, %s10
  $region1: #{small_lprnn_forward.1} parent=0
    #allocation3 [shape = 'u8[8192]{0}', space=vmem, size = 0x2000, scoped, tag = 'output window, operand 0, single buffered']
    #allocation4 [shape = 's32[1]{0}', space=sflag, size = 0x4, scoped, tag = 'scoped memory for small_lprnn_forward.1']
    %14 = vsyncpa [#allocation4], 0
    // Predicated region
    $region2: #{small_lprnn_forward.1} parent=1 // pred_check
      _
    $region3: #{small_lprnn_forward.1} parent=1 // pred_check_branch
      %16 = sbr.rel (0) target = $region5
    $region4: #{small_lprnn_forward.1} parent=1 // pred_region
      _
    $region5: #{small_lprnn_forward.1} parent=1 // pred_fallthru
      _
    // Predicated region
    $region6: #{small_lprnn_forward.1} parent=1 // pred_check
      _
    $region7: #{small_lprnn_forward.1} parent=1 // pred_check_branch
      %18 = sbr.rel (0) target = $region9
    $region8: #{small_lprnn_forward.1} parent=1 // pred_region
      _
    $region9: #{small_lprnn_forward.1} parent=1 // pred_fallthru
      _
    // Predicated region
    $region10: #{small_lprnn_forward.1} parent=1 // pred_check
      _
    $region11: #{small_lprnn_forward.1} parent=1 // pred_check_branch
      %20 = sbr.rel (0) target = $region13
    $region12: #{small_lprnn_forward.1} parent=1 // pred_region
      _
    $region13: #{small_lprnn_forward.1} parent=1 // pred_fallthru
      _
    // Predicated region
    $region14: #{small_lprnn_forward.1} parent=1 // pred_check
      _
    $region15: #{small_lprnn_forward.1} parent=1 // pred_check_branch
      %22 = sbr.rel (0) target = $region17
    $region16: #{small_lprnn_forward.1} parent=1 // pred_region
      _
    $region17: #{small_lprnn_forward.1} parent=1 // pred_fallthru
      _
    // Predicated region
    $region18: #{small_lprnn_forward.1} parent=1 // pred_check
      _
    $region19: #{small_lprnn_forward.1} parent=1 // pred_check_branch
      %24 = sbr.rel (0) target = $region21
    $region20: #{small_lprnn_forward.1} parent=1 // pred_region
      _
    $region21: #{small_lprnn_forward.1} parent=1 // pred_fallthru
      _
    // Predicated region
    $region22: #{small_lprnn_forward.1} parent=1 // pred_check
      _
    $region23: #{small_lprnn_forward.1} parent=1 // pred_check_branch
      %26 = sbr.rel (0) target = $region25
    $region24: #{small_lprnn_forward.1} parent=1 // pred_region
      _
    $region25: #{small_lprnn_forward.1} parent=1 // pred_fallthru
      _
    // Predicated region
    $region26: #{small_lprnn_forward.1} parent=1 // pred_check
      _
    $region27: #{small_lprnn_forward.1} parent=1 // pred_check_branch
      %28 = sbr.rel (0) target = $region29
    $region28: #{small_lprnn_forward.1} parent=1 // pred_region
      _
    $region29: #{small_lprnn_forward.1} parent=1 // pred_fallthru
      _
    // Predicated region
    $region30: #{small_lprnn_forward.1} parent=1 // pred_check
      _
    $region31: #{small_lprnn_forward.1} parent=1 // pred_check_branch
      %30 = sbr.rel (0) target = $region33
    $region32: #{small_lprnn_forward.1} parent=1 // pred_region
      _
    $region33: #{small_lprnn_forward.1} parent=1 // pred_fallthru
      _
    // Predicated region
    $region34: #{small_lprnn_forward.1} parent=1 // pred_check
      _
    $region35: #{small_lprnn_forward.1} parent=1 // pred_check_branch
      %32 = sbr.rel (0) target = $region37
    $region36: #{small_lprnn_forward.1} parent=1 // pred_region
      _
    $region37: #{small_lprnn_forward.1} parent=1 // pred_fallthru
      _
    %v33 = vld [vmem:[%s0] sm:$0xff]
    %v34 = vld [vmem:[%s0 + $0x8] sm:$0xff]
    %v35 = vld [vmem:[%s1] sm:$0xff]
    %v36 = vld [vmem:[%s1 + $0x8] sm:$0xff]
    %v37 = vld [vmem:[%s2] sm:$0x1]
    %v39 = vlaneseq
    %v40 = vshrl.u32 %v39, 7
    %v41 = vsub.s32 0, %v40
    %v42 = vrot.slane %v37, %v41
    %vm44 = vcmask 130048
    %v46 = vsel %vm44, %v33, 0
    %v49 = vsel %vm44, %v34, 0
    %51 = vmatprep.subr.mxu0 0.0
    %52 = vmatpush1.msra.mxu0 0.0
    %53 = vmatprep.subr.mxu0 0.0
    %54 = vmatpush1.msra.mxu0 0.0
    %55 = vmatprep.subr.mxu0 0.0
    %56 = vmatpush1.msra.mxu0 0.0
    %57 = vmatprep.subr.mxu0 0.0
    %58 = vmatpush1.msra.mxu0 0.0
    %59 = vmatprep.subr.mxu0 0.0
    %60 = vmatpush1.msra.mxu0 0.0
    %61 = vmatprep.subr.mxu0 0.0
    %62 = vmatpush1.msra.mxu0 0.0
    %63 = vmatprep.subr.mxu0 0.0
    %64 = vmatpush1.msra.mxu0 0.0
    %65 = vmatprep.subr.mxu0 0.0
    %66 = vmatpush1.msra.mxu0 0.0
    %67 = vmatprep.subr.mxu0 0.0
    %68 = vmatpush1.msra.mxu0 0.0
    %69 = vmatprep.subr.mxu0 0.0
    %70 = vmatpush1.msra.mxu0 0.0
    %71 = vmatprep.subr.mxu0 0.0
    %72 = vmatpush1.msra.mxu0 0.0
    %73 = vmatprep.subr.mxu0 0.0
    %74 = vmatpush1.msra.mxu0 0.0
    %75 = vmatprep.subr.mxu0 0.0
    %76 = vmatpush1.msra.mxu0 0.0
    %77 = vmatprep.subr.mxu0 0.0
    %78 = vmatpush1.msra.mxu0 0.0
    %79 = vmatprep.subr.mxu0 0.0
    %80 = vmatpush1.msra.mxu0 %v36
    %81 = vmatprep.subr.mxu0 0.0
    %82 = vmatpush1.msra.mxu0 %v35
    %83 = vmatprep.subr.mxu0 0.0
    %84 = vmatpush2.msra.mxu0 0.0
    %85 = vmatprep.subr.mxu0 0.0
    %86 = vmatpush2.msra.mxu0 0.0
    %87 = vmatprep.subr.mxu0 0.0
    %88 = vmatpush2.msra.mxu0 0.0
    %89 = vmatprep.subr.mxu0 0.0
    %90 = vmatpush2.msra.mxu0 0.0
    %91 = vmatprep.subr.mxu0 0.0
    %92 = vmatpush2.msra.mxu0 0.0
    %93 = vmatprep.subr.mxu0 0.0
    %94 = vmatpush2.msra.mxu0 0.0
    %95 = vmatprep.subr.mxu0 0.0
    %96 = vmatpush2.msra.mxu0 0.0
    %97 = vmatprep.subr.mxu0 0.0
    %98 = vmatpush2.msra.mxu0 0.0
    %99 = vmatprep.subr.mxu0 0.0
    %100 = vmatpush2.msra.mxu0 0.0
    %101 = vmatprep.subr.mxu0 0.0
    %102 = vmatpush2.msra.mxu0 0.0
    %103 = vmatprep.subr.mxu0 0.0
    %104 = vmatpush2.msra.mxu0 0.0
    %105 = vmatprep.subr.mxu0 0.0
    %106 = vmatpush2.msra.mxu0 0.0
    %107 = vmatprep.subr.mxu0 0.0
    %108 = vmatpush2.msra.mxu0 0.0
    %109 = vmatprep.subr.mxu0 0.0
    %110 = vmatpush2.msra.mxu0 0.0
    %111 = vmatprep.subr.mxu0 0.0
    %112 = vmatpush2.msra.mxu0 0.0
    %113 = vmatprep.subr.mxu0 0.0
    %114 = vmatpush2.msra.mxu0 0.0
    %115 = vmatprep.mubr.f32.mxu0 0.0
    %116 = vmatmul.mubr.f32.gmra.mxu0 %v46
    %v117 = vpop.f32.mrf.mxu0
    %v118 = vadd.f32 %v42, %v117
    %v119 = vpop.f32.mrf.mxu0
    %120 = vmatprep.mubr.f32.mxu0 0.0
    %121 = vmatmul.mubr.f32.gmra.mxu0 %v49
    %v122 = vpop.f32.mrf.mxu0
    %v123 = vadd.f32 %v42, %v122
    %v124 = vpop.f32.mrf.mxu0
    %125 = vdwg.mxu0
    %v126 = vmax.f32 %v118, 0.0
    %v127 = vmax.f32 %v123, 0.0
    %v128 = vmin.f32 %v126, 6.0
    %v129 = vmin.f32 %v127, 6.0
    %v130 = vld [vmem:[%s3] sm:$0xff]
    %v131 = vld [vmem:[%s3 + $0x8] sm:$0xff]
    %v132 = vld [vmem:[%s3 + $0x10] sm:$0xff]
    %v133 = vld [vmem:[%s3 + $0x18] sm:$0xff]
    %v134 = vld [vmem:[%s3 + $0x20] sm:$0xff]
    %v135 = vld [vmem:[%s3 + $0x28] sm:$0xff]
    %v136 = vld [vmem:[%s3 + $0x30] sm:$0xff]
    %v137 = vld [vmem:[%s3 + $0x38] sm:$0xff]
    %v138 = vld [vmem:[%s5] sm:$0xff]
    %v139 = vld [vmem:[%s5 + $0x8] sm:$0xff]
    %v140 = vld [vmem:[%s5 + $0x10] sm:$0xff]
    %v141 = vld [vmem:[%s5 + $0x18] sm:$0xff]
    %v142 = vld [vmem:[%s5 + $0x20] sm:$0xff]
    %v143 = vld [vmem:[%s5 + $0x28] sm:$0xff]
    %v144 = vld [vmem:[%s5 + $0x30] sm:$0xff]
    %v145 = vld [vmem:[%s5 + $0x38] sm:$0xff]
    %v146 = vld [vmem:[%s4] sm:$0x1]
    %v148 = vlaneseq
    %v149 = vshrl.u32 %v148, 7
    %v150 = vsub.s32 0, %v149
    %v151 = vrot.slane %v146, %v150
    %v153 = vld [vmem:[%s6] sm:$0x1]
    %v155 = vlaneseq
    %v156 = vshrl.u32 %v155, 7
    %v157 = vsub.s32 0, %v156
    %v158 = vrot.slane %v153, %v157
    %v160 = vmul.f32 %v128, 0.2
    %v161 = vmul.f32 %v129, 0.2
    %v162 = vadd.f32 %v160, 0.0
    %v163 = vadd.f32 %v161, 0.0
    %v166 = vrot.slane %v163, 7
    %vm167 = vcmask 1041409
    %v168 = vsel %vm167, %v166, %v162
    %vm170 = vcmask 261120
    %v171 = vsel %vm170, %v168, 0.0
    %vm172 = vcmask 523264
    %v174 = vsel %vm172, %v171, 0
    %176 = vmatprep.subr.mxu0 0.0
    %177 = vmatpush1.msra.mxu0 0.0
    %178 = vmatprep.subr.mxu0 0.0
    %179 = vmatpush1.msra.mxu0 0.0
    %180 = vmatprep.subr.mxu0 0.0
    %181 = vmatpush1.msra.mxu0 0.0
    %182 = vmatprep.subr.mxu0 0.0
    %183 = vmatpush1.msra.mxu0 0.0
    %184 = vmatprep.subr.mxu0 0.0
    %185 = vmatpush1.msra.mxu0 0.0
    %186 = vmatprep.subr.mxu0 0.0
    %187 = vmatpush1.msra.mxu0 0.0
    %188 = vmatprep.subr.mxu0 0.0
    %189 = vmatpush1.msra.mxu0 0.0
    %190 = vmatprep.subr.mxu0 0.0
    %191 = vmatpush1.msra.mxu0 0.0
    %192 = vmatprep.subr.mxu0 0.0
    %193 = vmatpush1.msra.mxu0 %v137
    %194 = vmatprep.subr.mxu0 0.0
    %195 = vmatpush1.msra.mxu0 %v136
    %196 = vmatprep.subr.mxu0 0.0
    %197 = vmatpush1.msra.mxu0 %v135
    %198 = vmatprep.subr.mxu0 0.0
    %199 = vmatpush1.msra.mxu0 %v134
    %200 = vmatprep.subr.mxu0 0.0
    %201 = vmatpush1.msra.mxu0 %v133
    %202 = vmatprep.subr.mxu0 0.0
    %203 = vmatpush1.msra.mxu0 %v132
    %204 = vmatprep.subr.mxu0 0.0
    %205 = vmatpush1.msra.mxu0 %v131
    %206 = vmatprep.subr.mxu0 0.0
    %207 = vmatpush1.msra.mxu0 %v130
    %208 = vmatprep.subr.mxu0 0.0
    %209 = vmatpush2.msra.mxu0 0.0
    %210 = vmatprep.subr.mxu0 0.0
    %211 = vmatpush2.msra.mxu0 0.0
    %212 = vmatprep.subr.mxu0 0.0
    %213 = vmatpush2.msra.mxu0 0.0
    %214 = vmatprep.subr.mxu0 0.0
    %215 = vmatpush2.msra.mxu0 0.0
    %216 = vmatprep.subr.mxu0 0.0
    %217 = vmatpush2.msra.mxu0 0.0
    %218 = vmatprep.subr.mxu0 0.0
    %219 = vmatpush2.msra.mxu0 0.0
    %220 = vmatprep.subr.mxu0 0.0
    %221 = vmatpush2.msra.mxu0 0.0
    %222 = vmatprep.subr.mxu0 0.0
    %223 = vmatpush2.msra.mxu0 0.0
    %224 = vmatprep.subr.mxu0 0.0
    %225 = vmatpush2.msra.mxu0 0.0
    %226 = vmatprep.subr.mxu0 0.0
    %227 = vmatpush2.msra.mxu0 0.0
    %228 = vmatprep.subr.mxu0 0.0
    %229 = vmatpush2.msra.mxu0 0.0
    %230 = vmatprep.subr.mxu0 0.0
    %231 = vmatpush2.msra.mxu0 0.0
    %232 = vmatprep.subr.mxu0 0.0
    %233 = vmatpush2.msra.mxu0 0.0
    %234 = vmatprep.subr.mxu0 0.0
    %235 = vmatpush2.msra.mxu0 0.0
    %236 = vmatprep.subr.mxu0 0.0
    %237 = vmatpush2.msra.mxu0 0.0
    %238 = vmatprep.subr.mxu0 0.0
    %239 = vmatpush2.msra.mxu0 0.0
    %240 = vmatprep.mubr.f32.mxu0 0.0
    %241 = vmatmul.mubr.f32.gmra.mxu0 %v174
    %v242 = vpop.f32.mrf.mxu0
    %v243 = vadd.f32 %v151, %v242
    %v244 = vpop.f32.mrf.mxu0
    %245 = vdwg.mxu0
    %v246 = vmax.f32 %v243, 0.0
    %v247 = vmin.f32 %v246, 6.0
    %v248 = vmul.f32 %v247, 0.2
    %v249 = vadd.f32 %v248, 0.0
    %v250 = vsel %vm170, %v249, 0.0
    %v252 = vsel %vm172, %v250, 0
    %254 = vmatprep.subr.mxu0 0.0
    %255 = vmatpush1.msra.mxu0 0.0
    %256 = vmatprep.subr.mxu0 0.0
    %257 = vmatpush1.msra.mxu0 0.0
    %258 = vmatprep.subr.mxu0 0.0
    %259 = vmatpush1.msra.mxu0 0.0
    %260 = vmatprep.subr.mxu0 0.0
    %261 = vmatpush1.msra.mxu0 0.0
    %262 = vmatprep.subr.mxu0 0.0
    %263 = vmatpush1.msra.mxu0 0.0
    %264 = vmatprep.subr.mxu0 0.0
    %265 = vmatpush1.msra.mxu0 0.0
    %266 = vmatprep.subr.mxu0 0.0
    %267 = vmatpush1.msra.mxu0 0.0
    %268 = vmatprep.subr.mxu0 0.0
    %269 = vmatpush1.msra.mxu0 0.0
    %270 = vmatprep.subr.mxu0 0.0
    %271 = vmatpush1.msra.mxu0 %v145
    %272 = vmatprep.subr.mxu0 0.0
    %273 = vmatpush1.msra.mxu0 %v144
    %274 = vmatprep.subr.mxu0 0.0
    %275 = vmatpush1.msra.mxu0 %v143
    %276 = vmatprep.subr.mxu0 0.0
    %277 = vmatpush1.msra.mxu0 %v142
    %278 = vmatprep.subr.mxu0 0.0
    %279 = vmatpush1.msra.mxu0 %v141
    %280 = vmatprep.subr.mxu0 0.0
    %281 = vmatpush1.msra.mxu0 %v140
    %282 = vmatprep.subr.mxu0 0.0
    %283 = vmatpush1.msra.mxu0 %v139
    %284 = vmatprep.subr.mxu0 0.0
    %285 = vmatpush1.msra.mxu0 %v138
    %286 = vmatprep.subr.mxu0 0.0
    %287 = vmatpush2.msra.mxu0 0.0
    %288 = vmatprep.subr.mxu0 0.0
    %289 = vmatpush2.msra.mxu0 0.0
    %290 = vmatprep.subr.mxu0 0.0
    %291 = vmatpush2.msra.mxu0 0.0
    %292 = vmatprep.subr.mxu0 0.0
    %293 = vmatpush2.msra.mxu0 0.0
    %294 = vmatprep.subr.mxu0 0.0
    %295 = vmatpush2.msra.mxu0 0.0
    %296 = vmatprep.subr.mxu0 0.0
    %297 = vmatpush2.msra.mxu0 0.0
    %298 = vmatprep.subr.mxu0 0.0
    %299 = vmatpush2.msra.mxu0 0.0
    %300 = vmatprep.subr.mxu0 0.0
    %301 = vmatpush2.msra.mxu0 0.0
    %302 = vmatprep.subr.mxu0 0.0
    %303 = vmatpush2.msra.mxu0 0.0
    %304 = vmatprep.subr.mxu0 0.0
    %305 = vmatpush2.msra.mxu0 0.0
    %306 = vmatprep.subr.mxu0 0.0
    %307 = vmatpush2.msra.mxu0 0.0
    %308 = vmatprep.subr.mxu0 0.0
    %309 = vmatpush2.msra.mxu0 0.0
    %310 = vmatprep.subr.mxu0 0.0
    %311 = vmatpush2.msra.mxu0 0.0
    %312 = vmatprep.subr.mxu0 0.0
    %313 = vmatpush2.msra.mxu0 0.0
    %314 = vmatprep.subr.mxu0 0.0
    %315 = vmatpush2.msra.mxu0 0.0
    %316 = vmatprep.subr.mxu0 0.0
    %317 = vmatpush2.msra.mxu0 0.0
    %318 = vmatprep.mubr.f32.mxu0 0.0
    %319 = vmatmul.mubr.f32.gmra.mxu0 %v252
    %v320 = vpop.f32.mrf.mxu0
    %v321 = vadd.f32 %v158, %v320
    %v322 = vpop.f32.mrf.mxu0
    %323 = vdwg.mxu0
    %v324 = vmax.f32 %v321, 0.0
    %v325 = vmin.f32 %v324, 6.0
    %v326 = vmul.f32 %v325, 0.2
    %v327 = vadd.f32 %v326, 0.0
    %v330 = vunpack.c.l.s4 1966171168
    %v331 = vunpack.c.0.s8 %v330
    %v332 = vlaneseq
    %v333 = vshrl.u32 %v332, 7
    %v334 = vsub.s32 %v331, %v333
    %v335 = vrot.slane %v327, %v334
    %v336 = vcombine.high %v335, %v335
    %v338 = vunpack.c.l.s4 1966171168
    %v339 = vunpack.c.0.s8 %v338
    %v340 = vlaneseq
    %v341 = vshrl.u32 %v340, 7
    %v342 = vsub.s32 %v339, %v341
    %v343 = vrot.slane %v335, %v342
    %v345 = vunpack.c.l.s4 1966171168
    %v346 = vunpack.c.0.s8 %v345
    %v347 = vlaneseq
    %v348 = vshrl.u32 %v347, 7
    %v349 = vsub.s32 %v346, %v348
    %v350 = vrot.slane %v336, %v349
    %vm353 = vcmask 253952
    %354 = vst.msk [vmem:[#allocation2] sm:$0x1] %vm353, %v343
    %355 = vst.msk [vmem:[#allocation2 + $0x8] sm:$0x1] %vm353, %v350
    %v356 = vmul.f32 %v162, 0.8
    %v357 = vmul.f32 %v163, 0.8
    %v360 = vrot.slane %v160, 1
    %v361 = vrot.slane %v161, 1
    %v364 = vadd.f32 %v356, %v360
    %v365 = vadd.f32 %v357, %v361
    %v368 = vrot.slane %v365, 7
    %v369 = vsel %vm167, %v368, %v364
    %372 = vrot.lane.b32.xlu0 %v249, 32
    %v373 = vpop.permute.xlu0 %372
    %v375 = vsel %vm170, %v369, %v373
    %v377 = vsel %vm172, %v375, 0
    %379 = vmatprep.subr.mxu0 0.0
    %380 = vmatpush1.msra.mxu0 0.0
    %381 = vmatprep.subr.mxu0 0.0
    %382 = vmatpush1.msra.mxu0 0.0
    %383 = vmatprep.subr.mxu0 0.0
    %384 = vmatpush1.msra.mxu0 0.0
    %385 = vmatprep.subr.mxu0 0.0
    %386 = vmatpush1.msra.mxu0 0.0
    %387 = vmatprep.subr.mxu0 0.0
    %388 = vmatpush1.msra.mxu0 0.0
    %389 = vmatprep.subr.mxu0 0.0
    %390 = vmatpush1.msra.mxu0 0.0
    %391 = vmatprep.subr.mxu0 0.0
    %392 = vmatpush1.msra.mxu0 0.0
    %393 = vmatprep.subr.mxu0 0.0
    %394 = vmatpush1.msra.mxu0 0.0
    %395 = vmatprep.subr.mxu0 0.0
    %396 = vmatpush1.msra.mxu0 %v137
    %397 = vmatprep.subr.mxu0 0.0
    %398 = vmatpush1.msra.mxu0 %v136
    %399 = vmatprep.subr.mxu0 0.0
    %400 = vmatpush1.msra.mxu0 %v135
    %401 = vmatprep.subr.mxu0 0.0
    %402 = vmatpush1.msra.mxu0 %v134
    %403 = vmatprep.subr.mxu0 0.0
    %404 = vmatpush1.msra.mxu0 %v133
    %405 = vmatprep.subr.mxu0 0.0
    %406 = vmatpush1.msra.mxu0 %v132
    %407 = vmatprep.subr.mxu0 0.0
    %408 = vmatpush1.msra.mxu0 %v131
    %409 = vmatprep.subr.mxu0 0.0
    %410 = vmatpush1.msra.mxu0 %v130
    %411 = vmatprep.subr.mxu0 0.0
    %412 = vmatpush2.msra.mxu0 0.0
    %413 = vmatprep.subr.mxu0 0.0
    %414 = vmatpush2.msra.mxu0 0.0
    %415 = vmatprep.subr.mxu0 0.0
    %416 = vmatpush2.msra.mxu0 0.0
    %417 = vmatprep.subr.mxu0 0.0
    %418 = vmatpush2.msra.mxu0 0.0
    %419 = vmatprep.subr.mxu0 0.0
    %420 = vmatpush2.msra.mxu0 0.0
    %421 = vmatprep.subr.mxu0 0.0
    %422 = vmatpush2.msra.mxu0 0.0
    %423 = vmatprep.subr.mxu0 0.0
    %424 = vmatpush2.msra.mxu0 0.0
    %425 = vmatprep.subr.mxu0 0.0
    %426 = vmatpush2.msra.mxu0 0.0
    %427 = vmatprep.subr.mxu0 0.0
    %428 = vmatpush2.msra.mxu0 0.0
    %429 = vmatprep.subr.mxu0 0.0
    %430 = vmatpush2.msra.mxu0 0.0
    %431 = vmatprep.subr.mxu0 0.0
    %432 = vmatpush2.msra.mxu0 0.0
    %433 = vmatprep.subr.mxu0 0.0
    %434 = vmatpush2.msra.mxu0 0.0
    %435 = vmatprep.subr.mxu0 0.0
    %436 = vmatpush2.msra.mxu0 0.0
    %437 = vmatprep.subr.mxu0 0.0
    %438 = vmatpush2.msra.mxu0 0.0
    %439 = vmatprep.subr.mxu0 0.0
    %440 = vmatpush2.msra.mxu0 0.0
    %441 = vmatprep.subr.mxu0 0.0
    %442 = vmatpush2.msra.mxu0 0.0
    %443 = vmatprep.mubr.f32.mxu0 0.0
    %444 = vmatmul.mubr.f32.gmra.mxu0 %v377
    %v445 = vpop.f32.mrf.mxu0
    %v446 = vadd.f32 %v151, %v445
    %v447 = vpop.f32.mrf.mxu0
    %448 = vdwg.mxu0
    %v449 = vmul.f32 %v249, 0.8
    %v450 = vmax.f32 %v446, 0.0
    %v451 = vmin.f32 %v450, 6.0
    %v452 = vmul.f32 %v451, 0.2
    %v453 = vadd.f32 %v449, %v452
    %454 = vrot.lane.b32.xlu0 %v327, 32
    %v455 = vpop.permute.xlu0 %454
    %v457 = vsel %vm170, %v453, %v455
    %v459 = vsel %vm172, %v457, 0
    %461 = vmatprep.subr.mxu0 0.0
    %462 = vmatpush1.msra.mxu0 0.0
    %463 = vmatprep.subr.mxu0 0.0
    %464 = vmatpush1.msra.mxu0 0.0
    %465 = vmatprep.subr.mxu0 0.0
    %466 = vmatpush1.msra.mxu0 0.0
    %467 = vmatprep.subr.mxu0 0.0
    %468 = vmatpush1.msra.mxu0 0.0
    %469 = vmatprep.subr.mxu0 0.0
    %470 = vmatpush1.msra.mxu0 0.0
    %471 = vmatprep.subr.mxu0 0.0
    %472 = vmatpush1.msra.mxu0 0.0
    %473 = vmatprep.subr.mxu0 0.0
    %474 = vmatpush1.msra.mxu0 0.0
    %475 = vmatprep.subr.mxu0 0.0
    %476 = vmatpush1.msra.mxu0 0.0
    %477 = vmatprep.subr.mxu0 0.0
    %478 = vmatpush1.msra.mxu0 %v145
    %479 = vmatprep.subr.mxu0 0.0
    %480 = vmatpush1.msra.mxu0 %v144
    %481 = vmatprep.subr.mxu0 0.0
    %482 = vmatpush1.msra.mxu0 %v143
    %483 = vmatprep.subr.mxu0 0.0
    %484 = vmatpush1.msra.mxu0 %v142
    %485 = vmatprep.subr.mxu0 0.0
    %486 = vmatpush1.msra.mxu0 %v141
    %487 = vmatprep.subr.mxu0 0.0
    %488 = vmatpush1.msra.mxu0 %v140
    %489 = vmatprep.subr.mxu0 0.0
    %490 = vmatpush1.msra.mxu0 %v139
    %491 = vmatprep.subr.mxu0 0.0
    %492 = vmatpush1.msra.mxu0 %v138
    %493 = vmatprep.subr.mxu0 0.0
    %494 = vmatpush2.msra.mxu0 0.0
    %495 = vmatprep.subr.mxu0 0.0
    %496 = vmatpush2.msra.mxu0 0.0
    %497 = vmatprep.subr.mxu0 0.0
    %498 = vmatpush2.msra.mxu0 0.0
    %499 = vmatprep.subr.mxu0 0.0
    %500 = vmatpush2.msra.mxu0 0.0
    %501 = vmatprep.subr.mxu0 0.0
    %502 = vmatpush2.msra.mxu0 0.0
    %503 = vmatprep.subr.mxu0 0.0
    %504 = vmatpush2.msra.mxu0 0.0
    %505 = vmatprep.subr.mxu0 0.0
    %506 = vmatpush2.msra.mxu0 0.0
    %507 = vmatprep.subr.mxu0 0.0
    %508 = vmatpush2.msra.mxu0 0.0
    %509 = vmatprep.subr.mxu0 0.0
    %510 = vmatpush2.msra.mxu0 0.0
    %511 = vmatprep.subr.mxu0 0.0
    %512 = vmatpush2.msra.mxu0 0.0
    %513 = vmatprep.subr.mxu0 0.0
    %514 = vmatpush2.msra.mxu0 0.0
    %515 = vmatprep.subr.mxu0 0.0
    %516 = vmatpush2.msra.mxu0 0.0
    %517 = vmatprep.subr.mxu0 0.0
    %518 = vmatpush2.msra.mxu0 0.0
    %519 = vmatprep.subr.mxu0 0.0
    %520 = vmatpush2.msra.mxu0 0.0
    %521 = vmatprep.subr.mxu0 0.0
    %522 = vmatpush2.msra.mxu0 0.0
    %523 = vmatprep.subr.mxu0 0.0
    %524 = vmatpush2.msra.mxu0 0.0
    %525 = vmatprep.mubr.f32.mxu0 0.0
    %526 = vmatmul.mubr.f32.gmra.mxu0 %v459
    %v527 = vpop.f32.mrf.mxu0
    %v528 = vadd.f32 %v158, %v527
    %v529 = vpop.f32.mrf.mxu0
    %530 = vdwg.mxu0
    %v531 = vmul.f32 %v327, 0.8
    %v532 = vmax.f32 %v528, 0.0
    %v533 = vmin.f32 %v532, 6.0
    %v534 = vmul.f32 %v533, 0.2
    %v535 = vadd.f32 %v531, %v534
    %v538 = vunpack.c.l.s4 1966171168
    %v539 = vunpack.c.0.s8 %v538
    %v540 = vlaneseq
    %v541 = vshrl.u32 %v540, 7
    %v542 = vsub.s32 %v539, %v541
    %v543 = vrot.slane %v535, %v542
    %v544 = vcombine.high %v543, %v543
    %v546 = vunpack.c.l.s4 1966171168
    %v547 = vunpack.c.0.s8 %v546
    %v548 = vlaneseq
    %v549 = vshrl.u32 %v548, 7
    %v550 = vsub.s32 %v547, %v549
    %v551 = vrot.slane %v543, %v550
    %v553 = vunpack.c.l.s4 1966171168
    %v554 = vunpack.c.0.s8 %v553
    %v555 = vlaneseq
    %v556 = vshrl.u32 %v555, 7
    %v557 = vsub.s32 %v554, %v556
    %v558 = vrot.slane %v544, %v557
    %561 = vst.msk [vmem:[#allocation2 + $0x1] sm:$0x1] %vm353, %v551
    %562 = vst.msk [vmem:[#allocation2 + $0x9] sm:$0x1] %vm353, %v558
    %v563 = vmul.f32 %v364, 0.8
    %v564 = vmul.f32 %v365, 0.8
    %v565 = vrot.slane %v160, 2
    %v566 = vrot.slane %v161, 2
    %v569 = vadd.f32 %v563, %v565
    %v570 = vadd.f32 %v564, %v566
    %v573 = vrot.slane %v570, 7
    %v574 = vsel %vm167, %v573, %v569
    %577 = vrot.lane.b32.xlu0 %v453, 32
    %v578 = vpop.permute.xlu0 %577
    %v580 = vsel %vm170, %v574, %v578
    %v582 = vsel %vm172, %v580, 0
    %584 = vmatprep.subr.mxu0 0.0
    %585 = vmatpush1.msra.mxu0 0.0
    %586 = vmatprep.subr.mxu0 0.0
    %587 = vmatpush1.msra.mxu0 0.0
    %588 = vmatprep.subr.mxu0 0.0
    %589 = vmatpush1.msra.mxu0 0.0
    %590 = vmatprep.subr.mxu0 0.0
    %591 = vmatpush1.msra.mxu0 0.0
    %592 = vmatprep.subr.mxu0 0.0
    %593 = vmatpush1.msra.mxu0 0.0
    %594 = vmatprep.subr.mxu0 0.0
    %595 = vmatpush1.msra.mxu0 0.0
    %596 = vmatprep.subr.mxu0 0.0
    %597 = vmatpush1.msra.mxu0 0.0
    %598 = vmatprep.subr.mxu0 0.0
    %599 = vmatpush1.msra.mxu0 0.0
    %600 = vmatprep.subr.mxu0 0.0
    %601 = vmatpush1.msra.mxu0 %v137
    %602 = vmatprep.subr.mxu0 0.0
    %603 = vmatpush1.msra.mxu0 %v136
    %604 = vmatprep.subr.mxu0 0.0
    %605 = vmatpush1.msra.mxu0 %v135
    %606 = vmatprep.subr.mxu0 0.0
    %607 = vmatpush1.msra.mxu0 %v134
    %608 = vmatprep.subr.mxu0 0.0
    %609 = vmatpush1.msra.mxu0 %v133
    %610 = vmatprep.subr.mxu0 0.0
    %611 = vmatpush1.msra.mxu0 %v132
    %612 = vmatprep.subr.mxu0 0.0
    %613 = vmatpush1.msra.mxu0 %v131
    %614 = vmatprep.subr.mxu0 0.0
    %615 = vmatpush1.msra.mxu0 %v130
    %616 = vmatprep.subr.mxu0 0.0
    %617 = vmatpush2.msra.mxu0 0.0
    %618 = vmatprep.subr.mxu0 0.0
    %619 = vmatpush2.msra.mxu0 0.0
    %620 = vmatprep.subr.mxu0 0.0
    %621 = vmatpush2.msra.mxu0 0.0
    %622 = vmatprep.subr.mxu0 0.0
    %623 = vmatpush2.msra.mxu0 0.0
    %624 = vmatprep.subr.mxu0 0.0
    %625 = vmatpush2.msra.mxu0 0.0
    %626 = vmatprep.subr.mxu0 0.0
    %627 = vmatpush2.msra.mxu0 0.0
    %628 = vmatprep.subr.mxu0 0.0
    %629 = vmatpush2.msra.mxu0 0.0
    %630 = vmatprep.subr.mxu0 0.0
    %631 = vmatpush2.msra.mxu0 0.0
    %632 = vmatprep.subr.mxu0 0.0
    %633 = vmatpush2.msra.mxu0 0.0
    %634 = vmatprep.subr.mxu0 0.0
    %635 = vmatpush2.msra.mxu0 0.0
    %636 = vmatprep.subr.mxu0 0.0
    %637 = vmatpush2.msra.mxu0 0.0
    %638 = vmatprep.subr.mxu0 0.0
    %639 = vmatpush2.msra.mxu0 0.0
    %640 = vmatprep.subr.mxu0 0.0
    %641 = vmatpush2.msra.mxu0 0.0
    %642 = vmatprep.subr.mxu0 0.0
    %643 = vmatpush2.msra.mxu0 0.0
    %644 = vmatprep.subr.mxu0 0.0
    %645 = vmatpush2.msra.mxu0 0.0
    %646 = vmatprep.subr.mxu0 0.0
    %647 = vmatpush2.msra.mxu0 0.0
    %648 = vmatprep.mubr.f32.mxu0 0.0
    %649 = vmatmul.mubr.f32.gmra.mxu0 %v582
    %v650 = vpop.f32.mrf.mxu0
    %v651 = vadd.f32 %v151, %v650
    %v652 = vpop.f32.mrf.mxu0
    %653 = vdwg.mxu0
    %v654 = vmul.f32 %v453, 0.8
    %v655 = vmax.f32 %v651, 0.0
    %v656 = vmin.f32 %v655, 6.0
    %v657 = vmul.f32 %v656, 0.2
    %v658 = vadd.f32 %v654, %v657
    %659 = vrot.lane.b32.xlu0 %v535, 32
    %v660 = vpop.permute.xlu0 %659
    %v662 = vsel %vm170, %v658, %v660
    %v664 = vsel %vm172, %v662, 0
    %666 = vmatprep.subr.mxu0 0.0
    %667 = vmatpush1.msra.mxu0 0.0
    %668 = vmatprep.subr.mxu0 0.0
    %669 = vmatpush1.msra.mxu0 0.0
    %670 = vmatprep.subr.mxu0 0.0
    %671 = vmatpush1.msra.mxu0 0.0
    %672 = vmatprep.subr.mxu0 0.0
    %673 = vmatpush1.msra.mxu0 0.0
    %674 = vmatprep.subr.mxu0 0.0
    %675 = vmatpush1.msra.mxu0 0.0
    %676 = vmatprep.subr.mxu0 0.0
    %677 = vmatpush1.msra.mxu0 0.0
    %678 = vmatprep.subr.mxu0 0.0
    %679 = vmatpush1.msra.mxu0 0.0
    %680 = vmatprep.subr.mxu0 0.0
    %681 = vmatpush1.msra.mxu0 0.0
    %682 = vmatprep.subr.mxu0 0.0
    %683 = vmatpush1.msra.mxu0 %v145
    %684 = vmatprep.subr.mxu0 0.0
    %685 = vmatpush1.msra.mxu0 %v144
    %686 = vmatprep.subr.mxu0 0.0
    %687 = vmatpush1.msra.mxu0 %v143
    %688 = vmatprep.subr.mxu0 0.0
    %689 = vmatpush1.msra.mxu0 %v142
    %690 = vmatprep.subr.mxu0 0.0
    %691 = vmatpush1.msra.mxu0 %v141
    %692 = vmatprep.subr.mxu0 0.0
    %693 = vmatpush1.msra.mxu0 %v140
    %694 = vmatprep.subr.mxu0 0.0
    %695 = vmatpush1.msra.mxu0 %v139
    %696 = vmatprep.subr.mxu0 0.0
    %697 = vmatpush1.msra.mxu0 %v138
    %698 = vmatprep.subr.mxu0 0.0
    %699 = vmatpush2.msra.mxu0 0.0
    %700 = vmatprep.subr.mxu0 0.0
    %701 = vmatpush2.msra.mxu0 0.0
    %702 = vmatprep.subr.mxu0 0.0
    %703 = vmatpush2.msra.mxu0 0.0
    %704 = vmatprep.subr.mxu0 0.0
    %705 = vmatpush2.msra.mxu0 0.0
    %706 = vmatprep.subr.mxu0 0.0
    %707 = vmatpush2.msra.mxu0 0.0
    %708 = vmatprep.subr.mxu0 0.0
    %709 = vmatpush2.msra.mxu0 0.0
    %710 = vmatprep.subr.mxu0 0.0
    %711 = vmatpush2.msra.mxu0 0.0
    %712 = vmatprep.subr.mxu0 0.0
    %713 = vmatpush2.msra.mxu0 0.0
    %714 = vmatprep.subr.mxu0 0.0
    %715 = vmatpush2.msra.mxu0 0.0
    %716 = vmatprep.subr.mxu0 0.0
    %717 = vmatpush2.msra.mxu0 0.0
    %718 = vmatprep.subr.mxu0 0.0
    %719 = vmatpush2.msra.mxu0 0.0
    %720 = vmatprep.subr.mxu0 0.0
    %721 = vmatpush2.msra.mxu0 0.0
    %722 = vmatprep.subr.mxu0 0.0
    %723 = vmatpush2.msra.mxu0 0.0
    %724 = vmatprep.subr.mxu0 0.0
    %725 = vmatpush2.msra.mxu0 0.0
    %726 = vmatprep.subr.mxu0 0.0
    %727 = vmatpush2.msra.mxu0 0.0
    %728 = vmatprep.subr.mxu0 0.0
    %729 = vmatpush2.msra.mxu0 0.0
    %730 = vmatprep.mubr.f32.mxu0 0.0
    %731 = vmatmul.mubr.f32.gmra.mxu0 %v664
    %v732 = vpop.f32.mrf.mxu0
    %v733 = vadd.f32 %v158, %v732
    %v734 = vpop.f32.mrf.mxu0
    %735 = vdwg.mxu0
    %v736 = vmul.f32 %v535, 0.8
    %v737 = vmax.f32 %v733, 0.0
    %v738 = vmin.f32 %v737, 6.0
    %v739 = vmul.f32 %v738, 0.2
    %v740 = vadd.f32 %v736, %v739
    %v743 = vunpack.c.l.s4 1966171168
    %v744 = vunpack.c.0.s8 %v743
    %v745 = vlaneseq
    %v746 = vshrl.u32 %v745, 7
    %v747 = vsub.s32 %v744, %v746
    %v748 = vrot.slane %v740, %v747
    %v749 = vcombine.high %v748, %v748
    %v751 = vunpack.c.l.s4 1966171168
    %v752 = vunpack.c.0.s8 %v751
    %v753 = vlaneseq
    %v754 = vshrl.u32 %v753, 7
    %v755 = vsub.s32 %v752, %v754
    %v756 = vrot.slane %v748, %v755
    %v758 = vunpack.c.l.s4 1966171168
    %v759 = vunpack.c.0.s8 %v758
    %v760 = vlaneseq
    %v761 = vshrl.u32 %v760, 7
    %v762 = vsub.s32 %v759, %v761
    %v763 = vrot.slane %v749, %v762
    %766 = vst.msk [vmem:[#allocation2 + $0x2] sm:$0x1] %vm353, %v756
    %767 = vst.msk [vmem:[#allocation2 + $0xa] sm:$0x1] %vm353, %v763
    %v768 = vmul.f32 %v569, 0.8
    %v769 = vmul.f32 %v570, 0.8
    %v770 = vrot.slane %v160, 3
    %v771 = vrot.slane %v161, 3
    %v774 = vadd.f32 %v768, %v770
    %v775 = vadd.f32 %v769, %v771
    %v778 = vrot.slane %v775, 7
    %v779 = vsel %vm167, %v778, %v774
    %782 = vrot.lane.b32.xlu0 %v658, 32
    %v783 = vpop.permute.xlu0 %782
    %v785 = vsel %vm170, %v779, %v783
    %v787 = vsel %vm172, %v785, 0
    %789 = vmatprep.subr.mxu0 0.0
    %790 = vmatpush1.msra.mxu0 0.0
    %791 = vmatprep.subr.mxu0 0.0
    %792 = vmatpush1.msra.mxu0 0.0
    %793 = vmatprep.subr.mxu0 0.0
    %794 = vmatpush1.msra.mxu0 0.0
    %795 = vmatprep.subr.mxu0 0.0
    %796 = vmatpush1.msra.mxu0 0.0
    %797 = vmatprep.subr.mxu0 0.0
    %798 = vmatpush1.msra.mxu0 0.0
    %799 = vmatprep.subr.mxu0 0.0
    %800 = vmatpush1.msra.mxu0 0.0
    %801 = vmatprep.subr.mxu0 0.0
    %802 = vmatpush1.msra.mxu0 0.0
    %803 = vmatprep.subr.mxu0 0.0
    %804 = vmatpush1.msra.mxu0 0.0
    %805 = vmatprep.subr.mxu0 0.0
    %806 = vmatpush1.msra.mxu0 %v137
    %807 = vmatprep.subr.mxu0 0.0
    %808 = vmatpush1.msra.mxu0 %v136
    %809 = vmatprep.subr.mxu0 0.0
    %810 = vmatpush1.msra.mxu0 %v135
    %811 = vmatprep.subr.mxu0 0.0
    %812 = vmatpush1.msra.mxu0 %v134
    %813 = vmatprep.subr.mxu0 0.0
    %814 = vmatpush1.msra.mxu0 %v133
    %815 = vmatprep.subr.mxu0 0.0
    %816 = vmatpush1.msra.mxu0 %v132
    %817 = vmatprep.subr.mxu0 0.0
    %818 = vmatpush1.msra.mxu0 %v131
    %819 = vmatprep.subr.mxu0 0.0
    %820 = vmatpush1.msra.mxu0 %v130
    %821 = vmatprep.subr.mxu0 0.0
    %822 = vmatpush2.msra.mxu0 0.0
    %823 = vmatprep.subr.mxu0 0.0
    %824 = vmatpush2.msra.mxu0 0.0
    %825 = vmatprep.subr.mxu0 0.0
    %826 = vmatpush2.msra.mxu0 0.0
    %827 = vmatprep.subr.mxu0 0.0
    %828 = vmatpush2.msra.mxu0 0.0
    %829 = vmatprep.subr.mxu0 0.0
    %830 = vmatpush2.msra.mxu0 0.0
    %831 = vmatprep.subr.mxu0 0.0
    %832 = vmatpush2.msra.mxu0 0.0
    %833 = vmatprep.subr.mxu0 0.0
    %834 = vmatpush2.msra.mxu0 0.0
    %835 = vmatprep.subr.mxu0 0.0
    %836 = vmatpush2.msra.mxu0 0.0
    %837 = vmatprep.subr.mxu0 0.0
    %838 = vmatpush2.msra.mxu0 0.0
    %839 = vmatprep.subr.mxu0 0.0
    %840 = vmatpush2.msra.mxu0 0.0
    %841 = vmatprep.subr.mxu0 0.0
    %842 = vmatpush2.msra.mxu0 0.0
    %843 = vmatprep.subr.mxu0 0.0
    %844 = vmatpush2.msra.mxu0 0.0
    %845 = vmatprep.subr.mxu0 0.0
    %846 = vmatpush2.msra.mxu0 0.0
    %847 = vmatprep.subr.mxu0 0.0
    %848 = vmatpush2.msra.mxu0 0.0
    %849 = vmatprep.subr.mxu0 0.0
    %850 = vmatpush2.msra.mxu0 0.0
    %851 = vmatprep.subr.mxu0 0.0
    %852 = vmatpush2.msra.mxu0 0.0
    %853 = vmatprep.mubr.f32.mxu0 0.0
    %854 = vmatmul.mubr.f32.gmra.mxu0 %v787
    %v855 = vpop.f32.mrf.mxu0
    %v856 = vadd.f32 %v151, %v855
    %v857 = vpop.f32.mrf.mxu0
    %858 = vdwg.mxu0
    %v859 = vmul.f32 %v658, 0.8
    %v860 = vmax.f32 %v856, 0.0
    %v861 = vmin.f32 %v860, 6.0
    %v862 = vmul.f32 %v861, 0.2
    %v863 = vadd.f32 %v859, %v862
    %864 = vrot.lane.b32.xlu0 %v740, 32
    %v865 = vpop.permute.xlu0 %864
    %v867 = vsel %vm170, %v863, %v865
    %v869 = vsel %vm172, %v867, 0
    %871 = vmatprep.subr.mxu0 0.0
    %872 = vmatpush1.msra.mxu0 0.0
    %873 = vmatprep.subr.mxu0 0.0
    %874 = vmatpush1.msra.mxu0 0.0
    %875 = vmatprep.subr.mxu0 0.0
    %876 = vmatpush1.msra.mxu0 0.0
    %877 = vmatprep.subr.mxu0 0.0
    %878 = vmatpush1.msra.mxu0 0.0
    %879 = vmatprep.subr.mxu0 0.0
    %880 = vmatpush1.msra.mxu0 0.0
    %881 = vmatprep.subr.mxu0 0.0
    %882 = vmatpush1.msra.mxu0 0.0
    %883 = vmatprep.subr.mxu0 0.0
    %884 = vmatpush1.msra.mxu0 0.0
    %885 = vmatprep.subr.mxu0 0.0
    %886 = vmatpush1.msra.mxu0 0.0
    %887 = vmatprep.subr.mxu0 0.0
    %888 = vmatpush1.msra.mxu0 %v145
    %889 = vmatprep.subr.mxu0 0.0
    %890 = vmatpush1.msra.mxu0 %v144
    %891 = vmatprep.subr.mxu0 0.0
    %892 = vmatpush1.msra.mxu0 %v143
    %893 = vmatprep.subr.mxu0 0.0
    %894 = vmatpush1.msra.mxu0 %v142
    %895 = vmatprep.subr.mxu0 0.0
    %896 = vmatpush1.msra.mxu0 %v141
    %897 = vmatprep.subr.mxu0 0.0
    %898 = vmatpush1.msra.mxu0 %v140
    %899 = vmatprep.subr.mxu0 0.0
    %900 = vmatpush1.msra.mxu0 %v139
    %901 = vmatprep.subr.mxu0 0.0
    %902 = vmatpush1.msra.mxu0 %v138
    %903 = vmatprep.subr.mxu0 0.0
    %904 = vmatpush2.msra.mxu0 0.0
    %905 = vmatprep.subr.mxu0 0.0
    %906 = vmatpush2.msra.mxu0 0.0
    %907 = vmatprep.subr.mxu0 0.0
    %908 = vmatpush2.msra.mxu0 0.0
    %909 = vmatprep.subr.mxu0 0.0
    %910 = vmatpush2.msra.mxu0 0.0
    %911 = vmatprep.subr.mxu0 0.0
    %912 = vmatpush2.msra.mxu0 0.0
    %913 = vmatprep.subr.mxu0 0.0
    %914 = vmatpush2.msra.mxu0 0.0
    %915 = vmatprep.subr.mxu0 0.0
    %916 = vmatpush2.msra.mxu0 0.0
    %917 = vmatprep.subr.mxu0 0.0
    %918 = vmatpush2.msra.mxu0 0.0
    %919 = vmatprep.subr.mxu0 0.0
    %920 = vmatpush2.msra.mxu0 0.0
    %921 = vmatprep.subr.mxu0 0.0
    %922 = vmatpush2.msra.mxu0 0.0
    %923 = vmatprep.subr.mxu0 0.0
    %924 = vmatpush2.msra.mxu0 0.0
    %925 = vmatprep.subr.mxu0 0.0
    %926 = vmatpush2.msra.mxu0 0.0
    %927 = vmatprep.subr.mxu0 0.0
    %928 = vmatpush2.msra.mxu0 0.0
    %929 = vmatprep.subr.mxu0 0.0
    %930 = vmatpush2.msra.mxu0 0.0
    %931 = vmatprep.subr.mxu0 0.0
    %932 = vmatpush2.msra.mxu0 0.0
    %933 = vmatprep.subr.mxu0 0.0
    %934 = vmatpush2.msra.mxu0 0.0
    %935 = vmatprep.mubr.f32.mxu0 0.0
    %936 = vmatmul.mubr.f32.gmra.mxu0 %v869
    %v937 = vpop.f32.mrf.mxu0
    %v938 = vadd.f32 %v158, %v937
    %v939 = vpop.f32.mrf.mxu0
    %940 = vdwg.mxu0
    %v941 = vmul.f32 %v740, 0.8
    %v942 = vmax.f32 %v938, 0.0
    %v943 = vmin.f32 %v942, 6.0
    %v944 = vmul.f32 %v943, 0.2
    %v945 = vadd.f32 %v941, %v944
    %v948 = vunpack.c.l.s4 1966171168
    %v949 = vunpack.c.0.s8 %v948
    %v950 = vlaneseq
    %v951 = vshrl.u32 %v950, 7
    %v952 = vsub.s32 %v949, %v951
    %v953 = vrot.slane %v945, %v952
    %v954 = vcombine.high %v953, %v953
    %v956 = vunpack.c.l.s4 1966171168
    %v957 = vunpack.c.0.s8 %v956
    %v958 = vlaneseq
    %v959 = vshrl.u32 %v958, 7
    %v960 = vsub.s32 %v957, %v959
    %v961 = vrot.slane %v953, %v960
    %v963 = vunpack.c.l.s4 1966171168
    %v964 = vunpack.c.0.s8 %v963
    %v965 = vlaneseq
    %v966 = vshrl.u32 %v965, 7
    %v967 = vsub.s32 %v964, %v966
    %v968 = vrot.slane %v954, %v967
    %971 = vst.msk [vmem:[#allocation2 + $0x3] sm:$0x1] %vm353, %v961
    %972 = vst.msk [vmem:[#allocation2 + $0xb] sm:$0x1] %vm353, %v968
    %v973 = vmul.f32 %v774, 0.8
    %v974 = vmul.f32 %v775, 0.8
    %v975 = vrot.slane %v160, 4
    %v976 = vrot.slane %v161, 4
    %v979 = vadd.f32 %v973, %v975
    %v980 = vadd.f32 %v974, %v976
    %v983 = vrot.slane %v980, 7
    %v984 = vsel %vm167, %v983, %v979
    %987 = vrot.lane.b32.xlu0 %v863, 32
    %v988 = vpop.permute.xlu0 %987
    %v990 = vsel %vm170, %v984, %v988
    %v992 = vsel %vm172, %v990, 0
    %994 = vmatprep.subr.mxu0 0.0
    %995 = vmatpush1.msra.mxu0 0.0
    %996 = vmatprep.subr.mxu0 0.0
    %997 = vmatpush1.msra.mxu0 0.0
    %998 = vmatprep.subr.mxu0 0.0
    %999 = vmatpush1.msra.mxu0 0.0
    %1000 = vmatprep.subr.mxu0 0.0
    %1001 = vmatpush1.msra.mxu0 0.0
    %1002 = vmatprep.subr.mxu0 0.0
    %1003 = vmatpush1.msra.mxu0 0.0
    %1004 = vmatprep.subr.mxu0 0.0
    %1005 = vmatpush1.msra.mxu0 0.0
    %1006 = vmatprep.subr.mxu0 0.0
    %1007 = vmatpush1.msra.mxu0 0.0
    %1008 = vmatprep.subr.mxu0 0.0
    %1009 = vmatpush1.msra.mxu0 0.0
    %1010 = vmatprep.subr.mxu0 0.0
    %1011 = vmatpush1.msra.mxu0 %v137
    %1012 = vmatprep.subr.mxu0 0.0
    %1013 = vmatpush1.msra.mxu0 %v136
    %1014 = vmatprep.subr.mxu0 0.0
    %1015 = vmatpush1.msra.mxu0 %v135
    %1016 = vmatprep.subr.mxu0 0.0
    %1017 = vmatpush1.msra.mxu0 %v134
    %1018 = vmatprep.subr.mxu0 0.0
    %1019 = vmatpush1.msra.mxu0 %v133
    %1020 = vmatprep.subr.mxu0 0.0
    %1021 = vmatpush1.msra.mxu0 %v132
    %1022 = vmatprep.subr.mxu0 0.0
    %1023 = vmatpush1.msra.mxu0 %v131
    %1024 = vmatprep.subr.mxu0 0.0
    %1025 = vmatpush1.msra.mxu0 %v130
    %1026 = vmatprep.subr.mxu0 0.0
    %1027 = vmatpush2.msra.mxu0 0.0
    %1028 = vmatprep.subr.mxu0 0.0
    %1029 = vmatpush2.msra.mxu0 0.0
    %1030 = vmatprep.subr.mxu0 0.0
    %1031 = vmatpush2.msra.mxu0 0.0
    %1032 = vmatprep.subr.mxu0 0.0
    %1033 = vmatpush2.msra.mxu0 0.0
    %1034 = vmatprep.subr.mxu0 0.0
    %1035 = vmatpush2.msra.mxu0 0.0
    %1036 = vmatprep.subr.mxu0 0.0
    %1037 = vmatpush2.msra.mxu0 0.0
    %1038 = vmatprep.subr.mxu0 0.0
    %1039 = vmatpush2.msra.mxu0 0.0
    %1040 = vmatprep.subr.mxu0 0.0
    %1041 = vmatpush2.msra.mxu0 0.0
    %1042 = vmatprep.subr.mxu0 0.0
    %1043 = vmatpush2.msra.mxu0 0.0
    %1044 = vmatprep.subr.mxu0 0.0
    %1045 = vmatpush2.msra.mxu0 0.0
    %1046 = vmatprep.subr.mxu0 0.0
    %1047 = vmatpush2.msra.mxu0 0.0
    %1048 = vmatprep.subr.mxu0 0.0
    %1049 = vmatpush2.msra.mxu0 0.0
    %1050 = vmatprep.subr.mxu0 0.0
    %1051 = vmatpush2.msra.mxu0 0.0
    %1052 = vmatprep.subr.mxu0 0.0
    %1053 = vmatpush2.msra.mxu0 0.0
    %1054 = vmatprep.subr.mxu0 0.0
    %1055 = vmatpush2.msra.mxu0 0.0
    %1056 = vmatprep.subr.mxu0 0.0
    %1057 = vmatpush2.msra.mxu0 0.0
    %1058 = vmatprep.mubr.f32.mxu0 0.0
    %1059 = vmatmul.mubr.f32.gmra.mxu0 %v992
    %v1060 = vpop.f32.mrf.mxu0
    %v1061 = vadd.f32 %v151, %v1060
    %v1062 = vpop.f32.mrf.mxu0
    %1063 = vdwg.mxu0
    %v1064 = vmul.f32 %v863, 0.8
    %v1065 = vmax.f32 %v1061, 0.0
    %v1066 = vmin.f32 %v1065, 6.0
    %v1067 = vmul.f32 %v1066, 0.2
    %v1068 = vadd.f32 %v1064, %v1067
    %1069 = vrot.lane.b32.xlu0 %v945, 32
    %v1070 = vpop.permute.xlu0 %1069
    %v1072 = vsel %vm170, %v1068, %v1070
    %v1074 = vsel %vm172, %v1072, 0
    %1076 = vmatprep.subr.mxu0 0.0
    %1077 = vmatpush1.msra.mxu0 0.0
    %1078 = vmatprep.subr.mxu0 0.0
    %1079 = vmatpush1.msra.mxu0 0.0
    %1080 = vmatprep.subr.mxu0 0.0
    %1081 = vmatpush1.msra.mxu0 0.0
    %1082 = vmatprep.subr.mxu0 0.0
    %1083 = vmatpush1.msra.mxu0 0.0
    %1084 = vmatprep.subr.mxu0 0.0
    %1085 = vmatpush1.msra.mxu0 0.0
    %1086 = vmatprep.subr.mxu0 0.0
    %1087 = vmatpush1.msra.mxu0 0.0
    %1088 = vmatprep.subr.mxu0 0.0
    %1089 = vmatpush1.msra.mxu0 0.0
    %1090 = vmatprep.subr.mxu0 0.0
    %1091 = vmatpush1.msra.mxu0 0.0
    %1092 = vmatprep.subr.mxu0 0.0
    %1093 = vmatpush1.msra.mxu0 %v145
    %1094 = vmatprep.subr.mxu0 0.0
    %1095 = vmatpush1.msra.mxu0 %v144
    %1096 = vmatprep.subr.mxu0 0.0
    %1097 = vmatpush1.msra.mxu0 %v143
    %1098 = vmatprep.subr.mxu0 0.0
    %1099 = vmatpush1.msra.mxu0 %v142
    %1100 = vmatprep.subr.mxu0 0.0
    %1101 = vmatpush1.msra.mxu0 %v141
    %1102 = vmatprep.subr.mxu0 0.0
    %1103 = vmatpush1.msra.mxu0 %v140
    %1104 = vmatprep.subr.mxu0 0.0
    %1105 = vmatpush1.msra.mxu0 %v139
    %1106 = vmatprep.subr.mxu0 0.0
    %1107 = vmatpush1.msra.mxu0 %v138
    %1108 = vmatprep.subr.mxu0 0.0
    %1109 = vmatpush2.msra.mxu0 0.0
    %1110 = vmatprep.subr.mxu0 0.0
    %1111 = vmatpush2.msra.mxu0 0.0
    %1112 = vmatprep.subr.mxu0 0.0
    %1113 = vmatpush2.msra.mxu0 0.0
    %1114 = vmatprep.subr.mxu0 0.0
    %1115 = vmatpush2.msra.mxu0 0.0
    %1116 = vmatprep.subr.mxu0 0.0
    %1117 = vmatpush2.msra.mxu0 0.0
    %1118 = vmatprep.subr.mxu0 0.0
    %1119 = vmatpush2.msra.mxu0 0.0
    %1120 = vmatprep.subr.mxu0 0.0
    %1121 = vmatpush2.msra.mxu0 0.0
    %1122 = vmatprep.subr.mxu0 0.0
    %1123 = vmatpush2.msra.mxu0 0.0
    %1124 = vmatprep.subr.mxu0 0.0
    %1125 = vmatpush2.msra.mxu0 0.0
    %1126 = vmatprep.subr.mxu0 0.0
    %1127 = vmatpush2.msra.mxu0 0.0
    %1128 = vmatprep.subr.mxu0 0.0
    %1129 = vmatpush2.msra.mxu0 0.0
    %1130 = vmatprep.subr.mxu0 0.0
    %1131 = vmatpush2.msra.mxu0 0.0
    %1132 = vmatprep.subr.mxu0 0.0
    %1133 = vmatpush2.msra.mxu0 0.0
    %1134 = vmatprep.subr.mxu0 0.0
    %1135 = vmatpush2.msra.mxu0 0.0
    %1136 = vmatprep.subr.mxu0 0.0
    %1137 = vmatpush2.msra.mxu0 0.0
    %1138 = vmatprep.subr.mxu0 0.0
    %1139 = vmatpush2.msra.mxu0 0.0
    %1140 = vmatprep.mubr.f32.mxu0 0.0
    %1141 = vmatmul.mubr.f32.gmra.mxu0 %v1074
    %v1142 = vpop.f32.mrf.mxu0
    %v1143 = vadd.f32 %v158, %v1142
    %v1144 = vpop.f32.mrf.mxu0
    %1145 = vdwg.mxu0
    %v1146 = vmul.f32 %v945, 0.8
    %v1147 = vmax.f32 %v1143, 0.0
    %v1148 = vmin.f32 %v1147, 6.0
    %v1149 = vmul.f32 %v1148, 0.2
    %v1150 = vadd.f32 %v1146, %v1149
    %v1153 = vunpack.c.l.s4 1966171168
    %v1154 = vunpack.c.0.s8 %v1153
    %v1155 = vlaneseq
    %v1156 = vshrl.u32 %v1155, 7
    %v1157 = vsub.s32 %v1154, %v1156
    %v1158 = vrot.slane %v1150, %v1157
    %v1159 = vcombine.high %v1158, %v1158
    %v1161 = vunpack.c.l.s4 1966171168
    %v1162 = vunpack.c.0.s8 %v1161
    %v1163 = vlaneseq
    %v1164 = vshrl.u32 %v1163, 7
    %v1165 = vsub.s32 %v1162, %v1164
    %v1166 = vrot.slane %v1158, %v1165
    %v1168 = vunpack.c.l.s4 1966171168
    %v1169 = vunpack.c.0.s8 %v1168
    %v1170 = vlaneseq
    %v1171 = vshrl.u32 %v1170, 7
    %v1172 = vsub.s32 %v1169, %v1171
    %v1173 = vrot.slane %v1159, %v1172
    %1176 = vst.msk [vmem:[#allocation2 + $0x4] sm:$0x1] %vm353, %v1166
    %1177 = vst.msk [vmem:[#allocation2 + $0xc] sm:$0x1] %vm353, %v1173
    %v1178 = vmul.f32 %v979, 0.8
    %v1179 = vmul.f32 %v980, 0.8
    %v1180 = vrot.slane %v160, 5
    %v1181 = vrot.slane %v161, 5
    %v1184 = vadd.f32 %v1178, %v1180
    %v1185 = vadd.f32 %v1179, %v1181
    %v1188 = vrot.slane %v1185, 7
    %v1189 = vsel %vm167, %v1188, %v1184
    %1192 = vrot.lane.b32.xlu0 %v1068, 32
    %v1193 = vpop.permute.xlu0 %1192
    %v1195 = vsel %vm170, %v1189, %v1193
    %v1197 = vsel %vm172, %v1195, 0
    %1199 = vmatprep.subr.mxu0 0.0
    %1200 = vmatpush1.msra.mxu0 0.0
    %1201 = vmatprep.subr.mxu0 0.0
    %1202 = vmatpush1.msra.mxu0 0.0
    %1203 = vmatprep.subr.mxu0 0.0
    %1204 = vmatpush1.msra.mxu0 0.0
    %1205 = vmatprep.subr.mxu0 0.0
    %1206 = vmatpush1.msra.mxu0 0.0
    %1207 = vmatprep.subr.mxu0 0.0
    %1208 = vmatpush1.msra.mxu0 0.0
    %1209 = vmatprep.subr.mxu0 0.0
    %1210 = vmatpush1.msra.mxu0 0.0
    %1211 = vmatprep.subr.mxu0 0.0
    %1212 = vmatpush1.msra.mxu0 0.0
    %1213 = vmatprep.subr.mxu0 0.0
    %1214 = vmatpush1.msra.mxu0 0.0
    %1215 = vmatprep.subr.mxu0 0.0
    %1216 = vmatpush1.msra.mxu0 %v137
    %1217 = vmatprep.subr.mxu0 0.0
    %1218 = vmatpush1.msra.mxu0 %v136
    %1219 = vmatprep.subr.mxu0 0.0
    %1220 = vmatpush1.msra.mxu0 %v135
    %1221 = vmatprep.subr.mxu0 0.0
    %1222 = vmatpush1.msra.mxu0 %v134
    %1223 = vmatprep.subr.mxu0 0.0
    %1224 = vmatpush1.msra.mxu0 %v133
    %1225 = vmatprep.subr.mxu0 0.0
    %1226 = vmatpush1.msra.mxu0 %v132
    %1227 = vmatprep.subr.mxu0 0.0
    %1228 = vmatpush1.msra.mxu0 %v131
    %1229 = vmatprep.subr.mxu0 0.0
    %1230 = vmatpush1.msra.mxu0 %v130
    %1231 = vmatprep.subr.mxu0 0.0
    %1232 = vmatpush2.msra.mxu0 0.0
    %1233 = vmatprep.subr.mxu0 0.0
    %1234 = vmatpush2.msra.mxu0 0.0
    %1235 = vmatprep.subr.mxu0 0.0
    %1236 = vmatpush2.msra.mxu0 0.0
    %1237 = vmatprep.subr.mxu0 0.0
    %1238 = vmatpush2.msra.mxu0 0.0
    %1239 = vmatprep.subr.mxu0 0.0
    %1240 = vmatpush2.msra.mxu0 0.0
    %1241 = vmatprep.subr.mxu0 0.0
    %1242 = vmatpush2.msra.mxu0 0.0
    %1243 = vmatprep.subr.mxu0 0.0
    %1244 = vmatpush2.msra.mxu0 0.0
    %1245 = vmatprep.subr.mxu0 0.0
    %1246 = vmatpush2.msra.mxu0 0.0
    %1247 = vmatprep.subr.mxu0 0.0
    %1248 = vmatpush2.msra.mxu0 0.0
    %1249 = vmatprep.subr.mxu0 0.0
    %1250 = vmatpush2.msra.mxu0 0.0
    %1251 = vmatprep.subr.mxu0 0.0
    %1252 = vmatpush2.msra.mxu0 0.0
    %1253 = vmatprep.subr.mxu0 0.0
    %1254 = vmatpush2.msra.mxu0 0.0
    %1255 = vmatprep.subr.mxu0 0.0
    %1256 = vmatpush2.msra.mxu0 0.0
    %1257 = vmatprep.subr.mxu0 0.0
    %1258 = vmatpush2.msra.mxu0 0.0
    %1259 = vmatprep.subr.mxu0 0.0
    %1260 = vmatpush2.msra.mxu0 0.0
    %1261 = vmatprep.subr.mxu0 0.0
    %1262 = vmatpush2.msra.mxu0 0.0
    %1263 = vmatprep.mubr.f32.mxu0 0.0
    %1264 = vmatmul.mubr.f32.gmra.mxu0 %v1197
    %v1265 = vpop.f32.mrf.mxu0
    %v1266 = vadd.f32 %v151, %v1265
    %v1267 = vpop.f32.mrf.mxu0
    %1268 = vdwg.mxu0
    %v1269 = vmul.f32 %v1068, 0.8
    %v1270 = vmax.f32 %v1266, 0.0
    %v1271 = vmin.f32 %v1270, 6.0
    %v1272 = vmul.f32 %v1271, 0.2
    %v1273 = vadd.f32 %v1269, %v1272
    %1274 = vrot.lane.b32.xlu0 %v1150, 32
    %v1275 = vpop.permute.xlu0 %1274
    %v1277 = vsel %vm170, %v1273, %v1275
    %v1279 = vsel %vm172, %v1277, 0
    %1281 = vmatprep.subr.mxu0 0.0
    %1282 = vmatpush1.msra.mxu0 0.0
    %1283 = vmatprep.subr.mxu0 0.0
    %1284 = vmatpush1.msra.mxu0 0.0
    %1285 = vmatprep.subr.mxu0 0.0
    %1286 = vmatpush1.msra.mxu0 0.0
    %1287 = vmatprep.subr.mxu0 0.0
    %1288 = vmatpush1.msra.mxu0 0.0
    %1289 = vmatprep.subr.mxu0 0.0
    %1290 = vmatpush1.msra.mxu0 0.0
    %1291 = vmatprep.subr.mxu0 0.0
    %1292 = vmatpush1.msra.mxu0 0.0
    %1293 = vmatprep.subr.mxu0 0.0
    %1294 = vmatpush1.msra.mxu0 0.0
    %1295 = vmatprep.subr.mxu0 0.0
    %1296 = vmatpush1.msra.mxu0 0.0
    %1297 = vmatprep.subr.mxu0 0.0
    %1298 = vmatpush1.msra.mxu0 %v145
    %1299 = vmatprep.subr.mxu0 0.0
    %1300 = vmatpush1.msra.mxu0 %v144
    %1301 = vmatprep.subr.mxu0 0.0
    %1302 = vmatpush1.msra.mxu0 %v143
    %1303 = vmatprep.subr.mxu0 0.0
    %1304 = vmatpush1.msra.mxu0 %v142
    %1305 = vmatprep.subr.mxu0 0.0
    %1306 = vmatpush1.msra.mxu0 %v141
    %1307 = vmatprep.subr.mxu0 0.0
    %1308 = vmatpush1.msra.mxu0 %v140
    %1309 = vmatprep.subr.mxu0 0.0
    %1310 = vmatpush1.msra.mxu0 %v139
    %1311 = vmatprep.subr.mxu0 0.0
    %1312 = vmatpush1.msra.mxu0 %v138
    %1313 = vmatprep.subr.mxu0 0.0
    %1314 = vmatpush2.msra.mxu0 0.0
    %1315 = vmatprep.subr.mxu0 0.0
    %1316 = vmatpush2.msra.mxu0 0.0
    %1317 = vmatprep.subr.mxu0 0.0
    %1318 = vmatpush2.msra.mxu0 0.0
    %1319 = vmatprep.subr.mxu0 0.0
    %1320 = vmatpush2.msra.mxu0 0.0
    %1321 = vmatprep.subr.mxu0 0.0
    %1322 = vmatpush2.msra.mxu0 0.0
    %1323 = vmatprep.subr.mxu0 0.0
    %1324 = vmatpush2.msra.mxu0 0.0
    %1325 = vmatprep.subr.mxu0 0.0
    %1326 = vmatpush2.msra.mxu0 0.0
    %1327 = vmatprep.subr.mxu0 0.0
    %1328 = vmatpush2.msra.mxu0 0.0
    %1329 = vmatprep.subr.mxu0 0.0
    %1330 = vmatpush2.msra.mxu0 0.0
    %1331 = vmatprep.subr.mxu0 0.0
    %1332 = vmatpush2.msra.mxu0 0.0
    %1333 = vmatprep.subr.mxu0 0.0
    %1334 = vmatpush2.msra.mxu0 0.0
    %1335 = vmatprep.subr.mxu0 0.0
    %1336 = vmatpush2.msra.mxu0 0.0
    %1337 = vmatprep.subr.mxu0 0.0
    %1338 = vmatpush2.msra.mxu0 0.0
    %1339 = vmatprep.subr.mxu0 0.0
    %1340 = vmatpush2.msra.mxu0 0.0
    %1341 = vmatprep.subr.mxu0 0.0
    %1342 = vmatpush2.msra.mxu0 0.0
    %1343 = vmatprep.subr.mxu0 0.0
    %1344 = vmatpush2.msra.mxu0 0.0
    %1345 = vmatprep.mubr.f32.mxu0 0.0
    %1346 = vmatmul.mubr.f32.gmra.mxu0 %v1279
    %v1347 = vpop.f32.mrf.mxu0
    %v1348 = vadd.f32 %v158, %v1347
    %v1349 = vpop.f32.mrf.mxu0
    %1350 = vdwg.mxu0
    %v1351 = vmul.f32 %v1150, 0.8
    %v1352 = vmax.f32 %v1348, 0.0
    %v1353 = vmin.f32 %v1352, 6.0
    %v1354 = vmul.f32 %v1353, 0.2
    %v1355 = vadd.f32 %v1351, %v1354
    %v1358 = vunpack.c.l.s4 1966171168
    %v1359 = vunpack.c.0.s8 %v1358
    %v1360 = vlaneseq
    %v1361 = vshrl.u32 %v1360, 7
    %v1362 = vsub.s32 %v1359, %v1361
    %v1363 = vrot.slane %v1355, %v1362
    %v1364 = vcombine.high %v1363, %v1363
    %v1366 = vunpack.c.l.s4 1966171168
    %v1367 = vunpack.c.0.s8 %v1366
    %v1368 = vlaneseq
    %v1369 = vshrl.u32 %v1368, 7
    %v1370 = vsub.s32 %v1367, %v1369
    %v1371 = vrot.slane %v1363, %v1370
    %v1373 = vunpack.c.l.s4 1966171168
    %v1374 = vunpack.c.0.s8 %v1373
    %v1375 = vlaneseq
    %v1376 = vshrl.u32 %v1375, 7
    %v1377 = vsub.s32 %v1374, %v1376
    %v1378 = vrot.slane %v1364, %v1377
    %1381 = vst.msk [vmem:[#allocation2 + $0x5] sm:$0x1] %vm353, %v1371
    %1382 = vst.msk [vmem:[#allocation2 + $0xd] sm:$0x1] %vm353, %v1378
    %v1383 = vmul.f32 %v1184, 0.8
    %v1384 = vmul.f32 %v1185, 0.8
    %v1385 = vrot.slane %v160, 6
    %v1386 = vrot.slane %v161, 6
    %v1389 = vadd.f32 %v1383, %v1385
    %v1390 = vadd.f32 %v1384, %v1386
    %v1393 = vrot.slane %v1390, 7
    %v1394 = vsel %vm167, %v1393, %v1389
    %1397 = vrot.lane.b32.xlu0 %v1273, 32
    %v1398 = vpop.permute.xlu0 %1397
    %v1400 = vsel %vm170, %v1394, %v1398
    %v1402 = vsel %vm172, %v1400, 0
    %1404 = vmatprep.subr.mxu0 0.0
    %1405 = vmatpush1.msra.mxu0 0.0
    %1406 = vmatprep.subr.mxu0 0.0
    %1407 = vmatpush1.msra.mxu0 0.0
    %1408 = vmatprep.subr.mxu0 0.0
    %1409 = vmatpush1.msra.mxu0 0.0
    %1410 = vmatprep.subr.mxu0 0.0
    %1411 = vmatpush1.msra.mxu0 0.0
    %1412 = vmatprep.subr.mxu0 0.0
    %1413 = vmatpush1.msra.mxu0 0.0
    %1414 = vmatprep.subr.mxu0 0.0
    %1415 = vmatpush1.msra.mxu0 0.0
    %1416 = vmatprep.subr.mxu0 0.0
    %1417 = vmatpush1.msra.mxu0 0.0
    %1418 = vmatprep.subr.mxu0 0.0
    %1419 = vmatpush1.msra.mxu0 0.0
    %1420 = vmatprep.subr.mxu0 0.0
    %1421 = vmatpush1.msra.mxu0 %v137
    %1422 = vmatprep.subr.mxu0 0.0
    %1423 = vmatpush1.msra.mxu0 %v136
    %1424 = vmatprep.subr.mxu0 0.0
    %1425 = vmatpush1.msra.mxu0 %v135
    %1426 = vmatprep.subr.mxu0 0.0
    %1427 = vmatpush1.msra.mxu0 %v134
    %1428 = vmatprep.subr.mxu0 0.0
    %1429 = vmatpush1.msra.mxu0 %v133
    %1430 = vmatprep.subr.mxu0 0.0
    %1431 = vmatpush1.msra.mxu0 %v132
    %1432 = vmatprep.subr.mxu0 0.0
    %1433 = vmatpush1.msra.mxu0 %v131
    %1434 = vmatprep.subr.mxu0 0.0
    %1435 = vmatpush1.msra.mxu0 %v130
    %1436 = vmatprep.subr.mxu0 0.0
    %1437 = vmatpush2.msra.mxu0 0.0
    %1438 = vmatprep.subr.mxu0 0.0
    %1439 = vmatpush2.msra.mxu0 0.0
    %1440 = vmatprep.subr.mxu0 0.0
    %1441 = vmatpush2.msra.mxu0 0.0
    %1442 = vmatprep.subr.mxu0 0.0
    %1443 = vmatpush2.msra.mxu0 0.0
    %1444 = vmatprep.subr.mxu0 0.0
    %1445 = vmatpush2.msra.mxu0 0.0
    %1446 = vmatprep.subr.mxu0 0.0
    %1447 = vmatpush2.msra.mxu0 0.0
    %1448 = vmatprep.subr.mxu0 0.0
    %1449 = vmatpush2.msra.mxu0 0.0
    %1450 = vmatprep.subr.mxu0 0.0
    %1451 = vmatpush2.msra.mxu0 0.0
    %1452 = vmatprep.subr.mxu0 0.0
    %1453 = vmatpush2.msra.mxu0 0.0
    %1454 = vmatprep.subr.mxu0 0.0
    %1455 = vmatpush2.msra.mxu0 0.0
    %1456 = vmatprep.subr.mxu0 0.0
    %1457 = vmatpush2.msra.mxu0 0.0
    %1458 = vmatprep.subr.mxu0 0.0
    %1459 = vmatpush2.msra.mxu0 0.0
    %1460 = vmatprep.subr.mxu0 0.0
    %1461 = vmatpush2.msra.mxu0 0.0
    %1462 = vmatprep.subr.mxu0 0.0
    %1463 = vmatpush2.msra.mxu0 0.0
    %1464 = vmatprep.subr.mxu0 0.0
    %1465 = vmatpush2.msra.mxu0 0.0
    %1466 = vmatprep.subr.mxu0 0.0
    %1467 = vmatpush2.msra.mxu0 0.0
    %1468 = vmatprep.mubr.f32.mxu0 0.0
    %1469 = vmatmul.mubr.f32.gmra.mxu0 %v1402
    %v1470 = vpop.f32.mrf.mxu0
    %v1471 = vadd.f32 %v151, %v1470
    %v1472 = vpop.f32.mrf.mxu0
    %1473 = vdwg.mxu0
    %v1474 = vmul.f32 %v1273, 0.8
    %v1475 = vmax.f32 %v1471, 0.0
    %v1476 = vmin.f32 %v1475, 6.0
    %v1477 = vmul.f32 %v1476, 0.2
    %v1478 = vadd.f32 %v1474, %v1477
    %1479 = vrot.lane.b32.xlu0 %v1355, 32
    %v1480 = vpop.permute.xlu0 %1479
    %v1482 = vsel %vm170, %v1478, %v1480
    %v1484 = vsel %vm172, %v1482, 0
    %1486 = vmatprep.subr.mxu0 0.0
    %1487 = vmatpush1.msra.mxu0 0.0
    %1488 = vmatprep.subr.mxu0 0.0
    %1489 = vmatpush1.msra.mxu0 0.0
    %1490 = vmatprep.subr.mxu0 0.0
    %1491 = vmatpush1.msra.mxu0 0.0
    %1492 = vmatprep.subr.mxu0 0.0
    %1493 = vmatpush1.msra.mxu0 0.0
    %1494 = vmatprep.subr.mxu0 0.0
    %1495 = vmatpush1.msra.mxu0 0.0
    %1496 = vmatprep.subr.mxu0 0.0
    %1497 = vmatpush1.msra.mxu0 0.0
    %1498 = vmatprep.subr.mxu0 0.0
    %1499 = vmatpush1.msra.mxu0 0.0
    %1500 = vmatprep.subr.mxu0 0.0
    %1501 = vmatpush1.msra.mxu0 0.0
    %1502 = vmatprep.subr.mxu0 0.0
    %1503 = vmatpush1.msra.mxu0 %v145
    %1504 = vmatprep.subr.mxu0 0.0
    %1505 = vmatpush1.msra.mxu0 %v144
    %1506 = vmatprep.subr.mxu0 0.0
    %1507 = vmatpush1.msra.mxu0 %v143
    %1508 = vmatprep.subr.mxu0 0.0
    %1509 = vmatpush1.msra.mxu0 %v142
    %1510 = vmatprep.subr.mxu0 0.0
    %1511 = vmatpush1.msra.mxu0 %v141
    %1512 = vmatprep.subr.mxu0 0.0
    %1513 = vmatpush1.msra.mxu0 %v140
    %1514 = vmatprep.subr.mxu0 0.0
    %1515 = vmatpush1.msra.mxu0 %v139
    %1516 = vmatprep.subr.mxu0 0.0
    %1517 = vmatpush1.msra.mxu0 %v138
    %1518 = vmatprep.subr.mxu0 0.0
    %1519 = vmatpush2.msra.mxu0 0.0
    %1520 = vmatprep.subr.mxu0 0.0
    %1521 = vmatpush2.msra.mxu0 0.0
    %1522 = vmatprep.subr.mxu0 0.0
    %1523 = vmatpush2.msra.mxu0 0.0
    %1524 = vmatprep.subr.mxu0 0.0
    %1525 = vmatpush2.msra.mxu0 0.0
    %1526 = vmatprep.subr.mxu0 0.0
    %1527 = vmatpush2.msra.mxu0 0.0
    %1528 = vmatprep.subr.mxu0 0.0
    %1529 = vmatpush2.msra.mxu0 0.0
    %1530 = vmatprep.subr.mxu0 0.0
    %1531 = vmatpush2.msra.mxu0 0.0
    %1532 = vmatprep.subr.mxu0 0.0
    %1533 = vmatpush2.msra.mxu0 0.0
    %1534 = vmatprep.subr.mxu0 0.0
    %1535 = vmatpush2.msra.mxu0 0.0
    %1536 = vmatprep.subr.mxu0 0.0
    %1537 = vmatpush2.msra.mxu0 0.0
    %1538 = vmatprep.subr.mxu0 0.0
    %1539 = vmatpush2.msra.mxu0 0.0
    %1540 = vmatprep.subr.mxu0 0.0
    %1541 = vmatpush2.msra.mxu0 0.0
    %1542 = vmatprep.subr.mxu0 0.0
    %1543 = vmatpush2.msra.mxu0 0.0
    %1544 = vmatprep.subr.mxu0 0.0
    %1545 = vmatpush2.msra.mxu0 0.0
    %1546 = vmatprep.subr.mxu0 0.0
    %1547 = vmatpush2.msra.mxu0 0.0
    %1548 = vmatprep.subr.mxu0 0.0
    %1549 = vmatpush2.msra.mxu0 0.0
    %1550 = vmatprep.mubr.f32.mxu0 0.0
    %1551 = vmatmul.mubr.f32.gmra.mxu0 %v1484
    %v1552 = vpop.f32.mrf.mxu0
    %v1553 = vadd.f32 %v158, %v1552
    %v1554 = vpop.f32.mrf.mxu0
    %1555 = vdwg.mxu0
    %v1556 = vmul.f32 %v1355, 0.8
    %v1557 = vmax.f32 %v1553, 0.0
    %v1558 = vmin.f32 %v1557, 6.0
    %v1559 = vmul.f32 %v1558, 0.2
    %v1560 = vadd.f32 %v1556, %v1559
    %v1563 = vunpack.c.l.s4 1966171168
    %v1564 = vunpack.c.0.s8 %v1563
    %v1565 = vlaneseq
    %v1566 = vshrl.u32 %v1565, 7
    %v1567 = vsub.s32 %v1564, %v1566
    %v1568 = vrot.slane %v1560, %v1567
    %v1569 = vcombine.high %v1568, %v1568
    %v1571 = vunpack.c.l.s4 1966171168
    %v1572 = vunpack.c.0.s8 %v1571
    %v1573 = vlaneseq
    %v1574 = vshrl.u32 %v1573, 7
    %v1575 = vsub.s32 %v1572, %v1574
    %v1576 = vrot.slane %v1568, %v1575
    %v1578 = vunpack.c.l.s4 1966171168
    %v1579 = vunpack.c.0.s8 %v1578
    %v1580 = vlaneseq
    %v1581 = vshrl.u32 %v1580, 7
    %v1582 = vsub.s32 %v1579, %v1581
    %v1583 = vrot.slane %v1569, %v1582
    %1586 = vst.msk [vmem:[#allocation2 + $0x6] sm:$0x1] %vm353, %v1576
    %1587 = vst.msk [vmem:[#allocation2 + $0xe] sm:$0x1] %vm353, %v1583
    %v1588 = vmul.f32 %v1389, 0.8
    %v1589 = vmul.f32 %v1390, 0.8
    %v1590 = vrot.slane %v160, 7
    %v1591 = vrot.slane %v161, 7
    %v1594 = vadd.f32 %v1588, %v1590
    %v1595 = vadd.f32 %v1589, %v1591
    %v1598 = vrot.slane %v1595, 7
    %v1599 = vsel %vm167, %v1598, %v1594
    %1602 = vrot.lane.b32.xlu0 %v1478, 32
    %v1603 = vpop.permute.xlu0 %1602
    %v1605 = vsel %vm170, %v1599, %v1603
    %v1607 = vsel %vm172, %v1605, 0
    %1609 = vmatprep.subr.mxu0 0.0
    %1610 = vmatpush1.msra.mxu0 0.0
    %1611 = vmatprep.subr.mxu0 0.0
    %1612 = vmatpush1.msra.mxu0 0.0
    %1613 = vmatprep.subr.mxu0 0.0
    %1614 = vmatpush1.msra.mxu0 0.0
    %1615 = vmatprep.subr.mxu0 0.0
    %1616 = vmatpush1.msra.mxu0 0.0
    %1617 = vmatprep.subr.mxu0 0.0
    %1618 = vmatpush1.msra.mxu0 0.0
    %1619 = vmatprep.subr.mxu0 0.0
    %1620 = vmatpush1.msra.mxu0 0.0
    %1621 = vmatprep.subr.mxu0 0.0
    %1622 = vmatpush1.msra.mxu0 0.0
    %1623 = vmatprep.subr.mxu0 0.0
    %1624 = vmatpush1.msra.mxu0 0.0
    %1625 = vmatprep.subr.mxu0 0.0
    %1626 = vmatpush1.msra.mxu0 %v137
    %1627 = vmatprep.subr.mxu0 0.0
    %1628 = vmatpush1.msra.mxu0 %v136
    %1629 = vmatprep.subr.mxu0 0.0
    %1630 = vmatpush1.msra.mxu0 %v135
    %1631 = vmatprep.subr.mxu0 0.0
    %1632 = vmatpush1.msra.mxu0 %v134
    %1633 = vmatprep.subr.mxu0 0.0
    %1634 = vmatpush1.msra.mxu0 %v133
    %1635 = vmatprep.subr.mxu0 0.0
    %1636 = vmatpush1.msra.mxu0 %v132
    %1637 = vmatprep.subr.mxu0 0.0
    %1638 = vmatpush1.msra.mxu0 %v131
    %1639 = vmatprep.subr.mxu0 0.0
    %1640 = vmatpush1.msra.mxu0 %v130
    %1641 = vmatprep.subr.mxu0 0.0
    %1642 = vmatpush2.msra.mxu0 0.0
    %1643 = vmatprep.subr.mxu0 0.0
    %1644 = vmatpush2.msra.mxu0 0.0
    %1645 = vmatprep.subr.mxu0 0.0
    %1646 = vmatpush2.msra.mxu0 0.0
    %1647 = vmatprep.subr.mxu0 0.0
    %1648 = vmatpush2.msra.mxu0 0.0
    %1649 = vmatprep.subr.mxu0 0.0
    %1650 = vmatpush2.msra.mxu0 0.0
    %1651 = vmatprep.subr.mxu0 0.0
    %1652 = vmatpush2.msra.mxu0 0.0
    %1653 = vmatprep.subr.mxu0 0.0
    %1654 = vmatpush2.msra.mxu0 0.0
    %1655 = vmatprep.subr.mxu0 0.0
    %1656 = vmatpush2.msra.mxu0 0.0
    %1657 = vmatprep.subr.mxu0 0.0
    %1658 = vmatpush2.msra.mxu0 0.0
    %1659 = vmatprep.subr.mxu0 0.0
    %1660 = vmatpush2.msra.mxu0 0.0
    %1661 = vmatprep.subr.mxu0 0.0
    %1662 = vmatpush2.msra.mxu0 0.0
    %1663 = vmatprep.subr.mxu0 0.0
    %1664 = vmatpush2.msra.mxu0 0.0
    %1665 = vmatprep.subr.mxu0 0.0
    %1666 = vmatpush2.msra.mxu0 0.0
    %1667 = vmatprep.subr.mxu0 0.0
    %1668 = vmatpush2.msra.mxu0 0.0
    %1669 = vmatprep.subr.mxu0 0.0
    %1670 = vmatpush2.msra.mxu0 0.0
    %1671 = vmatprep.subr.mxu0 0.0
    %1672 = vmatpush2.msra.mxu0 0.0
    %1673 = vmatprep.mubr.f32.mxu0 0.0
    %1674 = vmatmul.mubr.f32.gmra.mxu0 %v1607
    %v1675 = vpop.f32.mrf.mxu0
    %v1676 = vadd.f32 %v151, %v1675
    %v1677 = vpop.f32.mrf.mxu0
    %1678 = vdwg.mxu0
    %v1679 = vmul.f32 %v1478, 0.8
    %v1680 = vmax.f32 %v1676, 0.0
    %v1681 = vmin.f32 %v1680, 6.0
    %v1682 = vmul.f32 %v1681, 0.2
    %v1683 = vadd.f32 %v1679, %v1682
    %1684 = vrot.lane.b32.xlu0 %v1560, 32
    %v1685 = vpop.permute.xlu0 %1684
    %v1687 = vsel %vm170, %v1683, %v1685
    %v1689 = vsel %vm172, %v1687, 0
    %1691 = vmatprep.subr.mxu0 0.0
    %1692 = vmatpush1.msra.mxu0 0.0
    %1693 = vmatprep.subr.mxu0 0.0
    %1694 = vmatpush1.msra.mxu0 0.0
    %1695 = vmatprep.subr.mxu0 0.0
    %1696 = vmatpush1.msra.mxu0 0.0
    %1697 = vmatprep.subr.mxu0 0.0
    %1698 = vmatpush1.msra.mxu0 0.0
    %1699 = vmatprep.subr.mxu0 0.0
    %1700 = vmatpush1.msra.mxu0 0.0
    %1701 = vmatprep.subr.mxu0 0.0
    %1702 = vmatpush1.msra.mxu0 0.0
    %1703 = vmatprep.subr.mxu0 0.0
    %1704 = vmatpush1.msra.mxu0 0.0
    %1705 = vmatprep.subr.mxu0 0.0
    %1706 = vmatpush1.msra.mxu0 0.0
    %1707 = vmatprep.subr.mxu0 0.0
    %1708 = vmatpush1.msra.mxu0 %v145
    %1709 = vmatprep.subr.mxu0 0.0
    %1710 = vmatpush1.msra.mxu0 %v144
    %1711 = vmatprep.subr.mxu0 0.0
    %1712 = vmatpush1.msra.mxu0 %v143
    %1713 = vmatprep.subr.mxu0 0.0
    %1714 = vmatpush1.msra.mxu0 %v142
    %1715 = vmatprep.subr.mxu0 0.0
    %1716 = vmatpush1.msra.mxu0 %v141
    %1717 = vmatprep.subr.mxu0 0.0
    %1718 = vmatpush1.msra.mxu0 %v140
    %1719 = vmatprep.subr.mxu0 0.0
    %1720 = vmatpush1.msra.mxu0 %v139
    %1721 = vmatprep.subr.mxu0 0.0
    %1722 = vmatpush1.msra.mxu0 %v138
    %1723 = vmatprep.subr.mxu0 0.0
    %1724 = vmatpush2.msra.mxu0 0.0
    %1725 = vmatprep.subr.mxu0 0.0
    %1726 = vmatpush2.msra.mxu0 0.0
    %1727 = vmatprep.subr.mxu0 0.0
    %1728 = vmatpush2.msra.mxu0 0.0
    %1729 = vmatprep.subr.mxu0 0.0
    %1730 = vmatpush2.msra.mxu0 0.0
    %1731 = vmatprep.subr.mxu0 0.0
    %1732 = vmatpush2.msra.mxu0 0.0
    %1733 = vmatprep.subr.mxu0 0.0
    %1734 = vmatpush2.msra.mxu0 0.0
    %1735 = vmatprep.subr.mxu0 0.0
    %1736 = vmatpush2.msra.mxu0 0.0
    %1737 = vmatprep.subr.mxu0 0.0
    %1738 = vmatpush2.msra.mxu0 0.0
    %1739 = vmatprep.subr.mxu0 0.0
    %1740 = vmatpush2.msra.mxu0 0.0
    %1741 = vmatprep.subr.mxu0 0.0
    %1742 = vmatpush2.msra.mxu0 0.0
    %1743 = vmatprep.subr.mxu0 0.0
    %1744 = vmatpush2.msra.mxu0 0.0
    %1745 = vmatprep.subr.mxu0 0.0
    %1746 = vmatpush2.msra.mxu0 0.0
    %1747 = vmatprep.subr.mxu0 0.0
    %1748 = vmatpush2.msra.mxu0 0.0
    %1749 = vmatprep.subr.mxu0 0.0
    %1750 = vmatpush2.msra.mxu0 0.0
    %1751 = vmatprep.subr.mxu0 0.0
    %1752 = vmatpush2.msra.mxu0 0.0
    %1753 = vmatprep.subr.mxu0 0.0
    %1754 = vmatpush2.msra.mxu0 0.0
    %1755 = vmatprep.mubr.f32.mxu0 0.0
    %1756 = vmatmul.mubr.f32.gmra.mxu0 %v1689
    %v1757 = vpop.f32.mrf.mxu0
    %v1758 = vadd.f32 %v158, %v1757
    %v1759 = vpop.f32.mrf.mxu0
    %1760 = vdwg.mxu0
    %v1761 = vmul.f32 %v1560, 0.8
    %v1762 = vmax.f32 %v1758, 0.0
    %v1763 = vmin.f32 %v1762, 6.0
    %v1764 = vmul.f32 %v1763, 0.2
    %v1765 = vadd.f32 %v1761, %v1764
    %v1768 = vunpack.c.l.s4 1966171168
    %v1769 = vunpack.c.0.s8 %v1768
    %v1770 = vlaneseq
    %v1771 = vshrl.u32 %v1770, 7
    %v1772 = vsub.s32 %v1769, %v1771
    %v1773 = vrot.slane %v1765, %v1772
    %v1774 = vcombine.high %v1773, %v1773
    %v1776 = vunpack.c.l.s4 1966171168
    %v1777 = vunpack.c.0.s8 %v1776
    %v1778 = vlaneseq
    %v1779 = vshrl.u32 %v1778, 7
    %v1780 = vsub.s32 %v1777, %v1779
    %v1781 = vrot.slane %v1773, %v1780
    %v1783 = vunpack.c.l.s4 1966171168
    %v1784 = vunpack.c.0.s8 %v1783
    %v1785 = vlaneseq
    %v1786 = vshrl.u32 %v1785, 7
    %v1787 = vsub.s32 %v1784, %v1786
    %v1788 = vrot.slane %v1774, %v1787
    %1791 = vst.msk [vmem:[#allocation2 + $0x7] sm:$0x1] %vm353, %v1781
    %1792 = vst.msk [vmem:[#allocation2 + $0xf] sm:$0x1] %vm353, %v1788
    %v1793 = vld [vmem:[#allocation2] sm:$0xff]
    %v1794 = vld [vmem:[#allocation2 + $0x8] sm:$0xff]
    %v1795 = vld [vmem:[%s7] sm:$0xff]
    %v1796 = vld [vmem:[%s7 + $0x8] sm:$0xff]
    %v1797 = vld [vmem:[%s7 + $0x10] sm:$0xff]
    %v1798 = vld [vmem:[%s7 + $0x18] sm:$0xff]
    %v1799 = vld [vmem:[%s8] sm:$0x1]
    %v1801 = vlaneseq
    %v1802 = vshrl.u32 %v1801, 7
    %v1803 = vsub.s32 0, %v1802
    %v1804 = vrot.slane %v1799, %v1803
    %v1807 = vsel %vm170, %v1793, 0
    %v1810 = vsel %vm170, %v1794, 0
    %1812 = vmatprep.subr.mxu0 0.0
    %1813 = vmatpush1.msra.mxu0 0.0
    %1814 = vmatprep.subr.mxu0 0.0
    %1815 = vmatpush1.msra.mxu0 0.0
    %1816 = vmatprep.subr.mxu0 0.0
    %1817 = vmatpush1.msra.mxu0 0.0
    %1818 = vmatprep.subr.mxu0 0.0
    %1819 = vmatpush1.msra.mxu0 0.0
    %1820 = vmatprep.subr.mxu0 0.0
    %1821 = vmatpush1.msra.mxu0 0.0
    %1822 = vmatprep.subr.mxu0 0.0
    %1823 = vmatpush1.msra.mxu0 0.0
    %1824 = vmatprep.subr.mxu0 0.0
    %1825 = vmatpush1.msra.mxu0 0.0
    %1826 = vmatprep.subr.mxu0 0.0
    %1827 = vmatpush1.msra.mxu0 0.0
    %1828 = vmatprep.subr.mxu0 0.0
    %1829 = vmatpush1.msra.mxu0 0.0
    %1830 = vmatprep.subr.mxu0 0.0
    %1831 = vmatpush1.msra.mxu0 0.0
    %1832 = vmatprep.subr.mxu0 0.0
    %1833 = vmatpush1.msra.mxu0 0.0
    %1834 = vmatprep.subr.mxu0 0.0
    %1835 = vmatpush1.msra.mxu0 0.0
    %1836 = vmatprep.subr.mxu0 0.0
    %1837 = vmatpush1.msra.mxu0 %v1798
    %1838 = vmatprep.subr.mxu0 0.0
    %1839 = vmatpush1.msra.mxu0 %v1797
    %1840 = vmatprep.subr.mxu0 0.0
    %1841 = vmatpush1.msra.mxu0 %v1796
    %1842 = vmatprep.subr.mxu0 0.0
    %1843 = vmatpush1.msra.mxu0 %v1795
    %1844 = vmatprep.subr.mxu0 0.0
    %1845 = vmatpush2.msra.mxu0 0.0
    %1846 = vmatprep.subr.mxu0 0.0
    %1847 = vmatpush2.msra.mxu0 0.0
    %1848 = vmatprep.subr.mxu0 0.0
    %1849 = vmatpush2.msra.mxu0 0.0
    %1850 = vmatprep.subr.mxu0 0.0
    %1851 = vmatpush2.msra.mxu0 0.0
    %1852 = vmatprep.subr.mxu0 0.0
    %1853 = vmatpush2.msra.mxu0 0.0
    %1854 = vmatprep.subr.mxu0 0.0
    %1855 = vmatpush2.msra.mxu0 0.0
    %1856 = vmatprep.subr.mxu0 0.0
    %1857 = vmatpush2.msra.mxu0 0.0
    %1858 = vmatprep.subr.mxu0 0.0
    %1859 = vmatpush2.msra.mxu0 0.0
    %1860 = vmatprep.subr.mxu0 0.0
    %1861 = vmatpush2.msra.mxu0 0.0
    %1862 = vmatprep.subr.mxu0 0.0
    %1863 = vmatpush2.msra.mxu0 0.0
    %1864 = vmatprep.subr.mxu0 0.0
    %1865 = vmatpush2.msra.mxu0 0.0
    %1866 = vmatprep.subr.mxu0 0.0
    %1867 = vmatpush2.msra.mxu0 0.0
    %1868 = vmatprep.subr.mxu0 0.0
    %1869 = vmatpush2.msra.mxu0 0.0
    %1870 = vmatprep.subr.mxu0 0.0
    %1871 = vmatpush2.msra.mxu0 0.0
    %1872 = vmatprep.subr.mxu0 0.0
    %1873 = vmatpush2.msra.mxu0 0.0
    %1874 = vmatprep.subr.mxu0 0.0
    %1875 = vmatpush2.msra.mxu0 0.0
    %1876 = vmatprep.mubr.f32.mxu0 0.0
    %1877 = vmatmul.mubr.f32.gmra.mxu0 %v1807
    %v1878 = vpop.f32.mrf.mxu0
    %v1879 = vadd.f32 %v1804, %v1878
    %v1880 = vpop.f32.mrf.mxu0
    %1881 = vmatprep.mubr.f32.mxu0 0.0
    %1882 = vmatmul.mubr.f32.gmra.mxu0 %v1810
    %v1883 = vpop.f32.mrf.mxu0
    %v1884 = vadd.f32 %v1804, %v1883
    %v1885 = vpop.f32.mrf.mxu0
    %1886 = vdwg.mxu0
    %vm1887 = vcmask 80896
    %1888 = vst.msk [vmem:[#allocation3] sm:$0xff] %vm1887, %v1879
    %1889 = vst.msk [vmem:[#allocation3 + $0x8] sm:$0xff] %vm1887, %v1884
    // Predicated region
    $region38: #{small_lprnn_forward.1} parent=1 // pred_check
      _
    $region39: #{small_lprnn_forward.1} parent=1 // pred_check_branch
      %1891 = sbr.rel (0) target = $region41
    $region40: #{small_lprnn_forward.1} parent=1 // pred_region
      %s1893 = ssub.s32 256, 256
      %1894 = vsyncadd [#allocation4], %s1893
      %s1895 = sshll.u32 [#allocation3], 4
      %s1896 = int_to_ptr.vmem [resolvable:$true] %s1895
      %1901 = dma.vmem_to_hbm [thread:$0]  %s1896, 256, %s9, [#allocation4], 128, 128, 8
    $region41: #{small_lprnn_forward.1} parent=1 // pred_fallthru
      _
    // Predicated region
    $region42: #{small_lprnn_forward.1} parent=1 // pred_check
      _
    $region43: #{small_lprnn_forward.1} parent=1 // pred_check_branch
      %1903 = sbr.rel (0) target = $region45
    $region44: #{small_lprnn_forward.1} parent=1 // pred_region
      %1904 = dma.done [#allocation4], 256
    $region45: #{small_lprnn_forward.1} parent=1 // pred_fallthru
      _
    %1905 = vsyncpa [#allocation4], 1

</llo_original>
